<compile_context>
chip_gen: v6e
topology: v6e:2x2x1
jax: 0.10.0
libtpu: 0.0.40
codegen_flags: <defaults>
</compile_context>

<pallas_src>
import math
from functools import partial

import jax
import jax.numpy as jnp
from jax.experimental import pallas as pl
from jax.experimental.pallas import tpu as pltpu


def _round_up(v, m):
    return ((v + m - 1) // m) * m


def _vmem_capacity_bytes():
    """Physical VMEM of the local TPU generation (fallback: v7x-safe 64 MiB)."""
    try:
        info = pltpu.get_tpu_info()
        for name in ("vmem_capacity_bytes", "vmem_bytes", "vmem_size_bytes"):
            v = getattr(info, name, None)
            if v:
                return int(v)
    except Exception:
        pass
    return 64 << 20


def _encoder_kernel(x_ref, w_ref, b_ref, eps_ref, moments_ref, z_ref, kl_ref,
                    *, nz, nsamples):
    # In-kernel bf16 cast (VPU, hidden under the x DMA). Avoids a separate XLA pass
    # over x in HBM that a wrapper-side .astype(bf16) would cost (dominant stream).
    x = x_ref[...].astype(jnp.bfloat16)                       # (TB, D)
    w = w_ref[...]                                            # (D, Npad) bf16, VMEM-resident
    moments = jnp.dot(x, w, preferred_element_type=jnp.float32) + b_ref[...]
    moments_ref[...] = moments                                # lane-dense store (Npad % 128 == 0)

    mu = moments[:, :nz]                                      # (TB, nz)
    logvar = moments[:, nz:2 * nz]                            # (TB, nz)

    # reparameterize(): z = mu + eps * exp(0.5*logvar), lane-dense (TB, S*nz) slab
    std = jnp.exp(0.5 * logvar)                               # EUP
    eps = eps_ref[...].astype(jnp.float32)
    z_ref[...] = jnp.tile(mu, (1, nsamples)) + eps * jnp.tile(std, (1, nsamples))

    # encode() KL: 0.5 * sum(mu^2 + var - logvar - 1); var = std*std reuses the exp above.
    var = std * std
    kl_ref[...] = 0.5 * jnp.sum(mu * mu + var - logvar - 1.0, axis=1, keepdims=True)


def fuse_encoder_params(w_mu, b_mu, w_lv, b_lv):
    """Pre-fuse (and lane-pad) the two linear heads. Call once per parameter update and
    cache the result — hoisted out of the per-forward path (extra HBM pass otherwise)."""
    D, nz = w_mu.shape
    n_pad = _round_up(2 * nz, 128)            # lane-dense moments slab -> unmasked vst
    w = jnp.concatenate([w_mu, w_lv], axis=1)
    b = jnp.concatenate([b_mu, b_lv])
    pad = n_pad - 2 * nz
    if pad:
        w = jnp.pad(w, ((0, 0), (0, pad)))
        b = jnp.pad(b, (0, pad))
    return w.astype(jnp.bfloat16), b.reshape(1, n_pad).astype(jnp.float32)


def _choose_tile_b(B, D, x_itemsize, eps_itemsize, n_pad, z_lanes, vmem_cap):
    # Resident fused weight + bias; count 2x copies in case the runtime falls back to
    # default double buffering for the constant-index blocks.
    resident = 2 * (D * n_pad * 2 + n_pad * 4)
    # Double-buffered per-row streams: x in, eps in, moments/z/kl out.
    row_bytes = 2 * (D * x_itemsize + z_lanes * eps_itemsize
                     + n_pad * 4 + z_lanes * 4 + 128 * 4)
    budget = int(vmem_cap * 0.70) - resident
    cap = max(8, budget // max(row_bytes, 1))
    cap = min(cap, 1024)                              # 512–1024 rows ~ HBM roofline plateau
    if B >= 64:
        cap = min(cap, _round_up(-(-B // 2), 8))      # >=2 grid steps: v7x 2-TC + pipelining
    if B >= 2048:
        cap = min(cap, _round_up(-(-B // 4), 8))      # >=4 steps for deeper DMA/compute overlap
    tile_b = max(8, (cap // 8) * 8)
    return B if B <= tile_b else tile_b


def gaussian_encoder(x_nchw, w_fused, b_fused, eps, *, tile_b=None):
    """Returns (z, (mu, logvar), KL) matching GaussianEncoderBase.sample/encode semantics.

    x_nchw:  (B, C, H, W), any float dtype (cast to bf16 in-kernel for the MXU)
    w_fused: (D, Npad) bf16, b_fused: (1, Npad) f32 — from fuse_encoder_params (cached)
    eps:     (B, nsamples, nz) external N(0,1) noise (matches torch's normal_())
    """
    B = x_nchw.shape[0]
    D, n_pad = w_fused.shape
    nsamples, nz = eps.shape[1], eps.shape[2]
    z_lanes = nsamples * nz

    x2 = x_nchw.reshape(B, D)                 # free view (contiguous); NO wrapper-side cast
    eps_flat = eps.reshape(B, z_lanes)        # free view

    vmem_cap = _vmem_capacity_bytes()
    if tile_b is None:
        tile_b = _choose_tile_b(B, D, x2.dtype.itemsize, eps_flat.dtype.itemsize,
                                n_pad, z_lanes, vmem_cap)
    grid = (pl.cdiv(B, tile_b),)
    # ~96 MiB on v5e/v6e (128 MiB physical), ~48 MiB on v7x (64 MiB physical).
    vmem_limit = min(int(vmem_cap * 3 // 4), 100 << 20)

    cost = pl.CostEstimate(
        flops=2 * B * D * n_pad,
        transcendentals=B * nz,
        bytes_accessed=(x2.size * x2.dtype.itemsize + w_fused.size * 2
                        + b_fused.size * 4 + eps_flat.size * eps_flat.dtype.itemsize
                        + B * n_pad * 4 + B * z_lanes * 4 + B * 4),
    )

    kernel = partial(_encoder_kernel, nz=nz, nsamples=nsamples)
    out_shape = (
        jax.ShapeDtypeStruct((B, n_pad), jnp.float32),        # [mu | logvar | 0-pad]
        jax.ShapeDtypeStruct((B, z_lanes), jnp.float32),      # z (lane-dense)
        jax.ShapeDtypeStruct((B, 1), jnp.float32),            # KL
    )
    compiler_params = pltpu.CompilerParams(
        dimension_semantics=("parallel",),     # shard batch tiles across TCs (v7x megacore)
        vmem_limit_bytes=vmem_limit,
    )

    def build(single_buffer_weights):
        wkw = dict(pipeline_mode=pl.Buffered(1)) if single_buffer_weights else {}
        grid_spec = pltpu.PrefetchScalarGridSpec(
            num_scalar_prefetch=0,
            grid=grid,
            in_specs=[
                pl.BlockSpec((tile_b, D), lambda i: (i, 0)),              # x tile (orig dtype)
                pl.BlockSpec((D, n_pad), lambda i: (0, 0), **wkw),        # fused W (resident)
                pl.BlockSpec((1, n_pad), lambda i: (0, 0), **wkw),        # fused bias (resident)
                pl.BlockSpec((tile_b, z_lanes), lambda i: (i, 0)),        # eps tile
            ],
            out_specs=(
                pl.BlockSpec((tile_b, n_pad), lambda i: (i, 0)),
                pl.BlockSpec((tile_b, z_lanes), lambda i: (i, 0)),
                pl.BlockSpec((tile_b, 1), lambda i: (i, 0)),
            ),
        )
        return pl.pallas_call(kernel, out_shape=out_shape, grid_spec=grid_spec,
                              compiler_params=compiler_params, cost_estimate=cost)

    try:
        # Single-buffer the constant-index weight/bias (frees VMEM for bigger batch tiles).
        moments, z_flat, kl = build(True)(x2, w_fused, b_fused, eps_flat)
    except Exception:
        # Fallback for runtimes that reject Buffered(1): default double buffering.
        moments, z_flat, kl = build(False)(x2, w_fused, b_fused, eps_flat)

    mu = moments[:, :nz]
    logvar = moments[:, nz:2 * nz]
    z = z_flat.reshape(B, nsamples, nz)
    return z, (mu, logvar), kl[:, 0]


def _reference(x_nchw, w_mu, b_mu, w_lv, b_lv, eps, *, bf16_matmul=False):
    B = x_nchw.shape[0]
    x2 = x_nchw.reshape(B, -1)
    if bf16_matmul:
        x2m = x2.astype(jnp.bfloat16)
        wm = w_mu.astype(jnp.bfloat16)
        wl = w_lv.astype(jnp.bfloat16)
    else:
        x2m, wm, wl = x2.astype(jnp.float32), w_mu, w_lv
    mu = jnp.dot(x2m, wm, preferred_element_type=jnp.float32) + b_mu
    logvar = jnp.dot(x2m, wl, preferred_element_type=jnp.float32) + b_lv
    std = jnp.exp(0.5 * logvar)
    z = mu[:, None, :] + eps * std[:, None, :]
    kl = 0.5 * jnp.sum(mu ** 2 + jnp.exp(logvar) - logvar - 1.0, axis=1)
    return z, (mu, logvar), kl


if __name__ == "__main__":
    key = jax.random.PRNGKey(0)
    B, C, H, W = 2, 4, 16, 16
    D = C * H * W          # 1024
    nz = 32
    nsamples = 4           # nsamples * nz = 128 -> exact lane-dense z slab

    k_x, k_wmu, k_wlv, k_bmu, k_blv, k_eps = jax.random.split(key, 6)
    x = jax.random.normal(k_x, (B, C, H, W), dtype=jnp.float32)

    # Deterministic synthetic parameter init (Kaiming-ish scale); no checkpoint loading.
    scale = 1.0 / math.sqrt(D)
    w_mu = jax.random.normal(k_wmu, (D, nz), dtype=jnp.float32) * scale
    w_lv = jax.random.normal(k_wlv, (D, nz), dtype=jnp.float32) * scale
    b_mu = jax.random.normal(k_bmu, (nz,), dtype=jnp.float32) * 0.01
    b_lv = jax.random.normal(k_blv, (nz,), dtype=jnp.float32) * 0.01

    # eps ~ N(0,1), matching torch.zeros_like(std_expd).normal_()
    eps = jax.random.normal(k_eps, (B, nsamples, nz), dtype=jnp.float32)

    # Fuse/pad the heads once (cache per parameter update in real use).
    w_fused, b_fused = fuse_encoder_params(w_mu, b_mu, w_lv, b_lv)

    z, (mu, logvar), kl = gaussian_encoder(x, w_fused, b_fused, eps)
    jax.block_until_ready((z, mu, logvar, kl))

    # Tight check: same bf16-cast matmul operands as the kernel (verifies kernel logic).
    z_b, (mu_b, lv_b), kl_b = _reference(x, w_mu, b_mu, w_lv, b_lv, eps, bf16_matmul=True)
    assert jnp.allclose(mu, mu_b, atol=1e-3, rtol=1e-3)
    assert jnp.allclose(logvar, lv_b, atol=1e-3, rtol=1e-3)
    assert jnp.allclose(z, z_b, atol=1e-3, rtol=1e-3)
    assert jnp.allclose(kl, kl_b, atol=1e-2, rtol=1e-3)

    # Loose check: pure-fp32 reference (difference is only the bf16 matmul operands).
    z_r, (mu_r, lv_r), kl_r = _reference(x, w_mu, b_mu, w_lv, b_lv, eps, bf16_matmul=False)
    assert jnp.allclose(mu, mu_r, atol=3e-2, rtol=3e-2)
    assert jnp.allclose(logvar, lv_r, atol=3e-2, rtol=3e-2)
    assert jnp.allclose(z, z_r, atol=5e-2, rtol=5e-2)
    assert jnp.allclose(kl, kl_r, atol=5e-1, rtol=5e-2)

    print("KERNEL_OK")
</pallas_src>

<mosaic_0001>
module attributes {stable_mosaic.version = 11 : i64} {
  func.func @_encoder_kernel(%arg0: i32, %arg1: memref<2x1024xf32, #tpu.memory_space<vmem>>, %arg2: memref<1024x128xbf16, #tpu.memory_space<vmem>>, %arg3: memref<1x128xf32, #tpu.memory_space<vmem>>, %arg4: memref<2x128xf32, #tpu.memory_space<vmem>>, %arg5: memref<2x128xf32, #tpu.memory_space<vmem>>, %arg6: memref<2x128xf32, #tpu.memory_space<vmem>>, %arg7: memref<2x1xf32, #tpu.memory_space<vmem>>) attributes {dimension_semantics = [#tpu.dimension_semantics<parallel>], iteration_bounds = array<i64: 1>, scalar_prefetch = 0 : i64, scratch_operands = 0 : i64, tpu.core_type = #tpu.core_type<tc>, window_params = [{transform_indices = @transform_0, window_bounds = array<i64: 2, 1024>}, {pipeline_mode = #tpu.pipeline_mode<synchronous>, transform_indices = @transform_1, window_bounds = array<i64: 1024, 128>}, {pipeline_mode = #tpu.pipeline_mode<synchronous>, transform_indices = @transform_2, window_bounds = array<i64: 1, 128>}, {transform_indices = @transform_3, window_bounds = array<i64: 2, 128>}, {transform_indices = @transform_4, window_bounds = array<i64: 2, 128>}, {transform_indices = @transform_5, window_bounds = array<i64: 2, 128>}, {transform_indices = @transform_6, window_bounds = array<i64: 2, 1>}]} {
    %c0 = arith.constant 0 : index
    %c0_0 = arith.constant 0 : index
    %0 = vector.load %arg1[%c0, %c0_0] : memref<2x1024xf32, #tpu.memory_space<vmem>>, vector<2x1024xf32>
    %1 = arith.truncf %0 : vector<2x1024xf32> to vector<2x1024xbf16>
    %c0_1 = arith.constant 0 : index
    %c0_2 = arith.constant 0 : index
    %2 = vector.load %arg2[%c0_1, %c0_2] : memref<1024x128xbf16, #tpu.memory_space<vmem>>, vector<1024x128xbf16>
    %cst = arith.constant dense<0.000000e+00> : vector<2x128xf32>
    %3 = tpu.matmul %1, %2, %cst {dimension_numbers = #tpu.dot_dimension_numbers<[1], [0], [0], [1], [0, 0, 1, 1], [], []>} : vector<2x1024xbf16>, vector<1024x128xbf16>, vector<2x128xf32> -> vector<2x128xf32>
    %c0_3 = arith.constant 0 : index
    %c0_4 = arith.constant 0 : index
    %4 = vector.load %arg3[%c0_3, %c0_4] : memref<1x128xf32, #tpu.memory_space<vmem>>, vector<1x128xf32>
    %5 = vector.broadcast %4 : vector<1x128xf32> to vector<2x128xf32>
    %6 = arith.addf %3, %5 : vector<2x128xf32>
    %c0_5 = arith.constant 0 : index
    %c0_6 = arith.constant 0 : index
    %7 = vector.load %arg5[%c0_5, %c0_6] : memref<2x128xf32, #tpu.memory_space<vmem>>, vector<2x128xf32>
    tpu.vector_store %arg5[%c0_5, %c0_6], %6 {strides = array<i32>} : memref<2x128xf32, #tpu.memory_space<vmem>>, vector<2x128xf32>,
    %8 = vector.extract_strided_slice %6 {offsets = [0, 0], sizes = [2, 32], strides = [1, 1]} : vector<2x128xf32> to vector<2x32xf32>
    %9 = vector.extract_strided_slice %6 {offsets = [0, 32], sizes = [2, 32], strides = [1, 1]} : vector<2x128xf32> to vector<2x32xf32>
    %cst_7 = arith.constant 5.000000e-01 : f32
    %10 = vector.broadcast %cst_7 : f32 to vector<2x32xf32>
    %11 = arith.mulf %10, %9 : vector<2x32xf32>
    %12 = math.exp %11 : vector<2x32xf32>
    %c0_8 = arith.constant 0 : index
    %c0_9 = arith.constant 0 : index
    %13 = vector.load %arg4[%c0_8, %c0_9] : memref<2x128xf32, #tpu.memory_space<vmem>>, vector<2x128xf32>
    %14 = tpu.concatenate %8, %8, %8, %8 in 1 : vector<2x32xf32>, vector<2x32xf32>, vector<2x32xf32>, vector<2x32xf32> -> vector<2x128xf32>
    %15 = tpu.concatenate %12, %12, %12, %12 in 1 : vector<2x32xf32>, vector<2x32xf32>, vector<2x32xf32>, vector<2x32xf32> -> vector<2x128xf32>
    %16 = arith.mulf %13, %15 : vector<2x128xf32>
    %17 = arith.addf %14, %16 : vector<2x128xf32>
    %c0_10 = arith.constant 0 : index
    %c0_11 = arith.constant 0 : index
    %18 = vector.load %arg6[%c0_10, %c0_11] : memref<2x128xf32, #tpu.memory_space<vmem>>, vector<2x128xf32>
    tpu.vector_store %arg6[%c0_10, %c0_11], %17 {strides = array<i32>} : memref<2x128xf32, #tpu.memory_space<vmem>>, vector<2x128xf32>,
    %19 = arith.mulf %12, %12 : vector<2x32xf32>
    %20 = arith.mulf %8, %8 : vector<2x32xf32>
    %21 = arith.addf %20, %19 : vector<2x32xf32>
    %22 = arith.subf %21, %9 : vector<2x32xf32>
    %cst_12 = arith.constant 1.000000e+00 : f32
    %23 = vector.broadcast %cst_12 : f32 to vector<2x32xf32>
    %24 = arith.subf %22, %23 : vector<2x32xf32>
    %cst_13 = arith.constant dense<0.000000e+00> : vector<2xf32>
    %25 = vector.multi_reduction <add>, %24, %cst_13 [1] : vector<2x32xf32> to vector<2xf32>
    %26 = vector.shape_cast %25 : vector<2xf32> to vector<2x1xf32>
    %cst_14 = arith.constant 5.000000e-01 : f32
    %27 = vector.broadcast %cst_14 : f32 to vector<2x1xf32>
    %28 = arith.mulf %27, %26 : vector<2x1xf32>
    %c0_15 = arith.constant 0 : index
    %c0_16 = arith.constant 0 : index
    %29 = vector.load %arg7[%c0_15, %c0_16] : memref<2x1xf32, #tpu.memory_space<vmem>>, vector<2x1xf32>
    tpu.vector_store %arg7[%c0_15, %c0_16], %28 {strides = array<i32>} : memref<2x1xf32, #tpu.memory_space<vmem>>, vector<2x1xf32>,
    return
  }
  func.func @transform_0(%arg0: i32) -> (i32, i32) {
    %c0_i32 = arith.constant 0 : i32
    %c0_i32_0 = arith.constant 0 : i32
    return %arg0, %c0_i32 : i32, i32
  }
  func.func @transform_1(%arg0: i32) -> (i32, i32) {
    %c0_i32 = arith.constant 0 : i32
    %c0_i32_0 = arith.constant 0 : i32
    %c0_i32_1 = arith.constant 0 : i32
    return %c0_i32, %c0_i32_0 : i32, i32
  }
  func.func @transform_2(%arg0: i32) -> (i32, i32) {
    %c0_i32 = arith.constant 0 : i32
    %c0_i32_0 = arith.constant 0 : i32
    %c0_i32_1 = arith.constant 0 : i32
    return %c0_i32, %c0_i32_0 : i32, i32
  }
  func.func @transform_3(%arg0: i32) -> (i32, i32) {
    %c0_i32 = arith.constant 0 : i32
    %c0_i32_0 = arith.constant 0 : i32
    return %arg0, %c0_i32 : i32, i32
  }
  func.func @transform_4(%arg0: i32) -> (i32, i32) {
    %c0_i32 = arith.constant 0 : i32
    %c0_i32_0 = arith.constant 0 : i32
    return %arg0, %c0_i32 : i32, i32
  }
  func.func @transform_5(%arg0: i32) -> (i32, i32) {
    %c0_i32 = arith.constant 0 : i32
    %c0_i32_0 = arith.constant 0 : i32
    return %arg0, %c0_i32 : i32, i32
  }
  func.func @transform_6(%arg0: i32) -> (i32, i32) {
    %c0_i32 = arith.constant 0 : i32
    %c0_i32_0 = arith.constant 0 : i32
    return %arg0, %c0_i32 : i32, i32
  }
}

module attributes {stable_mosaic.version = 11 : i64} {
  func.func @_encoder_kernel(%arg0: i32, %arg1: memref<2x1024xf32, #tpu.memory_space<vmem>>, %arg2: memref<1024x128xbf16, #tpu.memory_space<vmem>>, %arg3: memref<1x128xf32, #tpu.memory_space<vmem>>, %arg4: memref<2x128xf32, #tpu.memory_space<vmem>>, %arg5: memref<2x128xf32, #tpu.memory_space<vmem>>, %arg6: memref<2x128xf32, #tpu.memory_space<vmem>>, %arg7: memref<2x1xf32, #tpu.memory_space<vmem>>) attributes {dimension_semantics = [#tpu.dimension_semantics<parallel>], iteration_bounds = array<i64: 1>, scalar_prefetch = 0 : i64, scratch_operands = 0 : i64, tpu.core_type = #tpu.core_type<tc>, window_params = [{transform_indices = @transform_0, window_bounds = array<i64: 2, 1024>}, {pipeline_mode = #tpu.pipeline_mode<synchronous>, transform_indices = @transform_1, window_bounds = array<i64: 1024, 128>}, {pipeline_mode = #tpu.pipeline_mode<synchronous>, transform_indices = @transform_2, window_bounds = array<i64: 1, 128>}, {transform_indices = @transform_3, window_bounds = array<i64: 2, 128>}, {transform_indices = @transform_4, window_bounds = array<i64: 2, 128>}, {transform_indices = @transform_5, window_bounds = array<i64: 2, 128>}, {transform_indices = @transform_6, window_bounds = array<i64: 2, 1>}]} {
    %c0 = arith.constant 0 : index
    %c0_0 = arith.constant 0 : index
    %0 = vector.load %arg1[%c0, %c0_0] : memref<2x1024xf32, #tpu.memory_space<vmem>>, vector<2x1024xf32>
    %1 = arith.truncf %0 : vector<2x1024xf32> to vector<2x1024xbf16>
    %c0_1 = arith.constant 0 : index
    %c0_2 = arith.constant 0 : index
    %2 = vector.load %arg2[%c0_1, %c0_2] : memref<1024x128xbf16, #tpu.memory_space<vmem>>, vector<1024x128xbf16>
    %cst = arith.constant dense<0.000000e+00> : vector<2x128xf32>
    %3 = tpu.matmul %1, %2, %cst {dimension_numbers = #tpu.dot_dimension_numbers<[1], [0], [0], [1], [0, 0, 1, 1], [], []>} : vector<2x1024xbf16>, vector<1024x128xbf16>, vector<2x128xf32> -> vector<2x128xf32>
    %c0_3 = arith.constant 0 : index
    %c0_4 = arith.constant 0 : index
    %4 = vector.load %arg3[%c0_3, %c0_4] : memref<1x128xf32, #tpu.memory_space<vmem>>, vector<1x128xf32>
    %5 = vector.broadcast %4 : vector<1x128xf32> to vector<2x128xf32>
    %6 = arith.addf %3, %5 : vector<2x128xf32>
    %c0_5 = arith.constant 0 : index
    %c0_6 = arith.constant 0 : index
    %7 = vector.load %arg5[%c0_5, %c0_6] : memref<2x128xf32, #tpu.memory_space<vmem>>, vector<2x128xf32>
    tpu.vector_store %arg5[%c0_5, %c0_6], %6 {strides = array<i32>} : memref<2x128xf32, #tpu.memory_space<vmem>>, vector<2x128xf32>,
    %8 = vector.extract_strided_slice %6 {offsets = [0, 0], sizes = [2, 32], strides = [1, 1]} : vector<2x128xf32> to vector<2x32xf32>
    %9 = vector.extract_strided_slice %6 {offsets = [0, 32], sizes = [2, 32], strides = [1, 1]} : vector<2x128xf32> to vector<2x32xf32>
    %cst_7 = arith.constant 5.000000e-01 : f32
    %10 = vector.broadcast %cst_7 : f32 to vector<2x32xf32>
    %11 = arith.mulf %10, %9 : vector<2x32xf32>
    %12 = math.exp %11 : vector<2x32xf32>
    %c0_8 = arith.constant 0 : index
    %c0_9 = arith.constant 0 : index
    %13 = vector.load %arg4[%c0_8, %c0_9] : memref<2x128xf32, #tpu.memory_space<vmem>>, vector<2x128xf32>
    %14 = tpu.concatenate %8, %8, %8, %8 in 1 : vector<2x32xf32>, vector<2x32xf32>, vector<2x32xf32>, vector<2x32xf32> -> vector<2x128xf32>
    %15 = tpu.concatenate %12, %12, %12, %12 in 1 : vector<2x32xf32>, vector<2x32xf32>, vector<2x32xf32>, vector<2x32xf32> -> vector<2x128xf32>
    %16 = arith.mulf %13, %15 : vector<2x128xf32>
    %17 = arith.addf %14, %16 : vector<2x128xf32>
    %c0_10 = arith.constant 0 : index
    %c0_11 = arith.constant 0 : index
    %18 = vector.load %arg6[%c0_10, %c0_11] : memref<2x128xf32, #tpu.memory_space<vmem>>, vector<2x128xf32>
    tpu.vector_store %arg6[%c0_10, %c0_11], %17 {strides = array<i32>} : memref<2x128xf32, #tpu.memory_space<vmem>>, vector<2x128xf32>,
    %19 = arith.mulf %12, %12 : vector<2x32xf32>
    %20 = arith.mulf %8, %8 : vector<2x32xf32>
    %21 = arith.addf %20, %19 : vector<2x32xf32>
    %22 = arith.subf %21, %9 : vector<2x32xf32>
    %cst_12 = arith.constant 1.000000e+00 : f32
    %23 = vector.broadcast %cst_12 : f32 to vector<2x32xf32>
    %24 = arith.subf %22, %23 : vector<2x32xf32>
    %cst_13 = arith.constant dense<0.000000e+00> : vector<2xf32>
    %25 = vector.multi_reduction <add>, %24, %cst_13 [1] : vector<2x32xf32> to vector<2xf32>
    %26 = vector.shape_cast %25 : vector<2xf32> to vector<2x1xf32>
    %cst_14 = arith.constant 5.000000e-01 : f32
    %27 = vector.broadcast %cst_14 : f32 to vector<2x1xf32>
    %28 = arith.mulf %27, %26 : vector<2x1xf32>
    %c0_15 = arith.constant 0 : index
    %c0_16 = arith.constant 0 : index
    %29 = vector.load %arg7[%c0_15, %c0_16] : memref<2x1xf32, #tpu.memory_space<vmem>>, vector<2x1xf32>
    tpu.vector_store %arg7[%c0_15, %c0_16], %28 {strides = array<i32>} : memref<2x1xf32, #tpu.memory_space<vmem>>, vector<2x1xf32>,
    return
  }
  func.func @transform_0(%arg0: i32) -> (i32, i32) {
    %c0_i32 = arith.constant 0 : i32
    %c0_i32_0 = arith.constant 0 : i32
    return %arg0, %c0_i32 : i32, i32
  }
  func.func @transform_1(%arg0: i32) -> (i32, i32) {
    %c0_i32 = arith.constant 0 : i32
    %c0_i32_0 = arith.constant 0 : i32
    %c0_i32_1 = arith.constant 0 : i32
    return %c0_i32, %c0_i32_0 : i32, i32
  }
  func.func @transform_2(%arg0: i32) -> (i32, i32) {
    %c0_i32 = arith.constant 0 : i32
    %c0_i32_0 = arith.constant 0 : i32
    %c0_i32_1 = arith.constant 0 : i32
    return %c0_i32, %c0_i32_0 : i32, i32
  }
  func.func @transform_3(%arg0: i32) -> (i32, i32) {
    %c0_i32 = arith.constant 0 : i32
    %c0_i32_0 = arith.constant 0 : i32
    return %arg0, %c0_i32 : i32, i32
  }
  func.func @transform_4(%arg0: i32) -> (i32, i32) {
    %c0_i32 = arith.constant 0 : i32
    %c0_i32_0 = arith.constant 0 : i32
    return %arg0, %c0_i32 : i32, i32
  }
  func.func @transform_5(%arg0: i32) -> (i32, i32) {
    %c0_i32 = arith.constant 0 : i32
    %c0_i32_0 = arith.constant 0 : i32
    return %arg0, %c0_i32 : i32, i32
  }
  func.func @transform_6(%arg0: i32) -> (i32, i32) {
    %c0_i32 = arith.constant 0 : i32
    %c0_i32_0 = arith.constant 0 : i32
    return %arg0, %c0_i32 : i32, i32
  }
}

</mosaic_0001>

<llo_original>
// kernel: tpu_custom_call.1
$region0: #{tpu_custom_call.1}
  #allocation0 [shape = 'u32[]', space=smem, size = 0x4, offset = 0x4, fixed_abs, tag = 'smem constant byte address 0x4 - core index']
  #allocation1 [shape = 'u32[144,128]{1,0:T(1,128)}', space=vmem, size = 0x12000, scoped, tag = 'internal scratch']
  %s0 = inlined_call_operand.hbm [shape: f32[2,1024], index: 0, kind: input, shape index: {}]
  %s1 = inlined_call_operand.hbm [shape: bf16[1024,128], index: 1, kind: input, shape index: {}]
  %s2 = inlined_call_operand.vmem [shape: f32[1,128], index: 2, kind: input, shape index: {}]
  %s3 = inlined_call_operand.vmem [shape: f32[2,128], index: 3, kind: input, shape index: {}]
  %s4 = inlined_call_operand.hbm [shape: f32[2,128], index: 4, kind: output, shape index: {0}]
  %s5 = inlined_call_operand.hbm [shape: f32[2,128], index: 5, kind: output, shape index: {1}]
  %s6 = inlined_call_operand.vmem [shape: f32[2,1], index: 6, kind: output, shape index: {2}]
  %7 = xla_tuple %s4, %s5, %s6
  %s8 = sld [smem:[#allocation0]]
  $region50: #{tpu_custom_call.1} parent=0
    _
  %s10 = ssub.s32 1, %s8
  %s11 = scalar_select 0, %s10, %s8
  $region1: #{tpu_custom_call.1} parent=0
    #allocation2 [shape = 'u8[8192]{0}', space=vmem, size = 0x2000, scoped, tag = 'input window, operand 0, single buffered']
    #allocation3 [shape = 's32[1]{0}', space=sflag, size = 0x4, scoped, tag = 'scoped memory for tpu_custom_call.1']
    #allocation4 [shape = 's32[1]{0}', space=sflag, size = 0x4, scoped, tag = 'scoped memory for tpu_custom_call.1']
    #allocation5 [shape = 'u8[262144]{0}', space=vmem, size = 0x40000, scoped, tag = 'input window, operand 1, single buffered']
    #allocation6 [shape = 's32[1]{0}', space=sflag, size = 0x4, scoped, tag = 'scoped memory for tpu_custom_call.1']
    #allocation7 [shape = 'u8[1024]{0}', space=vmem, size = 0x400, scoped, tag = 'output window, operand 0, single buffered']
    #allocation8 [shape = 'u8[1024]{0}', space=vmem, size = 0x400, scoped, tag = 'output window, operand 1, single buffered']
    #allocation9 [shape = 's32[1]{0}', space=sflag, size = 0x4, scoped, tag = 'scoped memory for tpu_custom_call.1']
    %12 = vsyncpa [#allocation3], 0
    %13 = vsyncpa [#allocation6], 0
    %14 = vsyncpa [#allocation4], 0
    %15 = vsyncpa [#allocation9], 0
    // Predicated region
    $region2: #{tpu_custom_call.1} parent=1 // pred_check
      _
    $region3: #{tpu_custom_call.1} parent=1 // pred_check_branch
      %17 = sbr.rel (0) target = $region5
    $region4: #{tpu_custom_call.1} parent=1 // pred_region
      %s19 = ssub.s32 256, 256
      %20 = vsyncadd [#allocation3], %s19
      %s22 = sshll.u32 [#allocation2], 4
      %s23 = int_to_ptr.vmem [resolvable:$true] %s22
      %25 = dma.hbm_to_vmem [thread:$0]  %s0, 256, %s23, [#allocation3]
    $region5: #{tpu_custom_call.1} parent=1 // pred_fallthru
      _
    // Predicated region
    $region6: #{tpu_custom_call.1} parent=1 // pred_check
      _
    $region7: #{tpu_custom_call.1} parent=1 // pred_check_branch
      %27 = sbr.rel (0) target = $region9
    $region8: #{tpu_custom_call.1} parent=1 // pred_region
      %s29 = ssub.s32 8192, 8192
      %30 = vsyncadd [#allocation6], %s29
      %s31 = sshll.u32 [#allocation5], 4
      %s32 = int_to_ptr.vmem [resolvable:$true] %s31
      %37 = dma.hbm_to_vmem [thread:$0]  %s1, 8192, %s32, [#allocation6], 64, 64, 4
    $region9: #{tpu_custom_call.1} parent=1 // pred_fallthru
      _
    // Predicated region
    $region10: #{tpu_custom_call.1} parent=1 // pred_check
      _
    $region11: #{tpu_custom_call.1} parent=1 // pred_check_branch
      %39 = sbr.rel (0) target = $region13
    $region12: #{tpu_custom_call.1} parent=1 // pred_region
      _
    $region13: #{tpu_custom_call.1} parent=1 // pred_fallthru
      _
    // Predicated region
    $region14: #{tpu_custom_call.1} parent=1 // pred_check
      _
    $region15: #{tpu_custom_call.1} parent=1 // pred_check_branch
      %41 = sbr.rel (0) target = $region17
    $region16: #{tpu_custom_call.1} parent=1 // pred_region
      _
    $region17: #{tpu_custom_call.1} parent=1 // pred_fallthru
      _
    // Predicated region
    $region18: #{tpu_custom_call.1} parent=1 // pred_check
      _
    $region19: #{tpu_custom_call.1} parent=1 // pred_check_branch
      %43 = sbr.rel (0) target = $region21
    $region20: #{tpu_custom_call.1} parent=1 // pred_region
      %44 = dma.done [#allocation3], 256
    $region21: #{tpu_custom_call.1} parent=1 // pred_fallthru
      _
    // Predicated region
    $region22: #{tpu_custom_call.1} parent=1 // pred_check
      _
    $region23: #{tpu_custom_call.1} parent=1 // pred_check_branch
      %46 = sbr.rel (0) target = $region25
    $region24: #{tpu_custom_call.1} parent=1 // pred_region
      %47 = dma.done [#allocation6], 8192
    $region25: #{tpu_custom_call.1} parent=1 // pred_fallthru
      _
    %v49 = vld [vmem:[#allocation2] sm:$0xff]
    %v50 = vld [vmem:[#allocation2 + $0x8] sm:$0xff]
    %v53 = vcombine.high %v49, %v49
    %v55 = vunpack.c.l.s4 1983009808
    %v56 = vunpack.c.0.s8 %v55
    %v57 = vlaneseq
    %v58 = vshrl.u32 %v57, 7
    %v59 = vsub.s32 %v56, %v58
    %v60 = vrot.slane %v49, %v59
    %v62 = vunpack.c.l.s4 1983009808
    %v63 = vunpack.c.0.s8 %v62
    %v64 = vlaneseq
    %v65 = vshrl.u32 %v64, 7
    %v66 = vsub.s32 %v63, %v65
    %v67 = vrot.slane %v53, %v66
    %v68 = vcombine.high %v60, %v60
    %v69 = vcombine.high %v67, %v67
    %v70 = vcombine.high %v50, %v50
    %v72 = vunpack.c.l.s4 1983009808
    %v73 = vunpack.c.0.s8 %v72
    %v74 = vlaneseq
    %v75 = vshrl.u32 %v74, 7
    %v76 = vsub.s32 %v73, %v75
    %v77 = vrot.slane %v50, %v76
    %v79 = vunpack.c.l.s4 1983009808
    %v80 = vunpack.c.0.s8 %v79
    %v81 = vlaneseq
    %v82 = vshrl.u32 %v81, 7
    %v83 = vsub.s32 %v80, %v82
    %v84 = vrot.slane %v70, %v83
    %v85 = vcombine.high %v77, %v77
    %v86 = vcombine.high %v84, %v84
    %v95 = vpack.c.bf16 %v60, %v60
    %v96 = vpack.c.bf16 %v68, %v68
    %v97 = vpack.c.bf16 %v67, %v67
    %v98 = vpack.c.bf16 %v69, %v69
    %v99 = vpack.c.bf16 %v77, %v77
    %v100 = vpack.c.bf16 %v85, %v85
    %v101 = vpack.c.bf16 %v84, %v84
    %v102 = vpack.c.bf16 %v86, %v86
    %v103 = vld [vmem:[#allocation5] sm:$0xf]
    %v104 = vld [vmem:[#allocation5 + $0x4] sm:$0xf]
    %v105 = vld [vmem:[#allocation5 + $0x8] sm:$0xf]
    %v106 = vld [vmem:[#allocation5 + $0xc] sm:$0xf]
    %v107 = vld [vmem:[#allocation5 + $0x10] sm:$0xf]
    %v108 = vld [vmem:[#allocation5 + $0x14] sm:$0xf]
    %v109 = vld [vmem:[#allocation5 + $0x18] sm:$0xf]
    %v110 = vld [vmem:[#allocation5 + $0x1c] sm:$0xf]
    %v111 = vld [vmem:[#allocation5 + $0x20] sm:$0xf]
    %v112 = vld [vmem:[#allocation5 + $0x24] sm:$0xf]
    %v113 = vld [vmem:[#allocation5 + $0x28] sm:$0xf]
    %v114 = vld [vmem:[#allocation5 + $0x2c] sm:$0xf]
    %v115 = vld [vmem:[#allocation5 + $0x30] sm:$0xf]
    %v116 = vld [vmem:[#allocation5 + $0x34] sm:$0xf]
    %v117 = vld [vmem:[#allocation5 + $0x38] sm:$0xf]
    %v118 = vld [vmem:[#allocation5 + $0x3c] sm:$0xf]
    %v119 = vld [vmem:[#allocation5 + $0x40] sm:$0xf]
    %v120 = vld [vmem:[#allocation5 + $0x44] sm:$0xf]
    %v121 = vld [vmem:[#allocation5 + $0x48] sm:$0xf]
    %v122 = vld [vmem:[#allocation5 + $0x4c] sm:$0xf]
    %v123 = vld [vmem:[#allocation5 + $0x50] sm:$0xf]
    %v124 = vld [vmem:[#allocation5 + $0x54] sm:$0xf]
    %v125 = vld [vmem:[#allocation5 + $0x58] sm:$0xf]
    %v126 = vld [vmem:[#allocation5 + $0x5c] sm:$0xf]
    %v127 = vld [vmem:[#allocation5 + $0x60] sm:$0xf]
    %v128 = vld [vmem:[#allocation5 + $0x64] sm:$0xf]
    %v129 = vld [vmem:[#allocation5 + $0x68] sm:$0xf]
    %v130 = vld [vmem:[#allocation5 + $0x6c] sm:$0xf]
    %v131 = vld [vmem:[#allocation5 + $0x70] sm:$0xf]
    %v132 = vld [vmem:[#allocation5 + $0x74] sm:$0xf]
    %v133 = vld [vmem:[#allocation5 + $0x78] sm:$0xf]
    %v134 = vld [vmem:[#allocation5 + $0x7c] sm:$0xf]
    %v135 = vld [vmem:[#allocation5 + $0x80] sm:$0xf]
    %v136 = vld [vmem:[#allocation5 + $0x84] sm:$0xf]
    %v137 = vld [vmem:[#allocation5 + $0x88] sm:$0xf]
    %v138 = vld [vmem:[#allocation5 + $0x8c] sm:$0xf]
    %v139 = vld [vmem:[#allocation5 + $0x90] sm:$0xf]
    %v140 = vld [vmem:[#allocation5 + $0x94] sm:$0xf]
    %v141 = vld [vmem:[#allocation5 + $0x98] sm:$0xf]
    %v142 = vld [vmem:[#allocation5 + $0x9c] sm:$0xf]
    %v143 = vld [vmem:[#allocation5 + $0xa0] sm:$0xf]
    %v144 = vld [vmem:[#allocation5 + $0xa4] sm:$0xf]
    %v145 = vld [vmem:[#allocation5 + $0xa8] sm:$0xf]
    %v146 = vld [vmem:[#allocation5 + $0xac] sm:$0xf]
    %v147 = vld [vmem:[#allocation5 + $0xb0] sm:$0xf]
    %v148 = vld [vmem:[#allocation5 + $0xb4] sm:$0xf]
    %v149 = vld [vmem:[#allocation5 + $0xb8] sm:$0xf]
    %v150 = vld [vmem:[#allocation5 + $0xbc] sm:$0xf]
    %v151 = vld [vmem:[#allocation5 + $0xc0] sm:$0xf]
    %v152 = vld [vmem:[#allocation5 + $0xc4] sm:$0xf]
    %v153 = vld [vmem:[#allocation5 + $0xc8] sm:$0xf]
    %v154 = vld [vmem:[#allocation5 + $0xcc] sm:$0xf]
    %v155 = vld [vmem:[#allocation5 + $0xd0] sm:$0xf]
    %v156 = vld [vmem:[#allocation5 + $0xd4] sm:$0xf]
    %v157 = vld [vmem:[#allocation5 + $0xd8] sm:$0xf]
    %v158 = vld [vmem:[#allocation5 + $0xdc] sm:$0xf]
    %v159 = vld [vmem:[#allocation5 + $0xe0] sm:$0xf]
    %v160 = vld [vmem:[#allocation5 + $0xe4] sm:$0xf]
    %v161 = vld [vmem:[#allocation5 + $0xe8] sm:$0xf]
    %v162 = vld [vmem:[#allocation5 + $0xec] sm:$0xf]
    %v163 = vld [vmem:[#allocation5 + $0xf0] sm:$0xf]
    %v164 = vld [vmem:[#allocation5 + $0xf4] sm:$0xf]
    %v165 = vld [vmem:[#allocation5 + $0xf8] sm:$0xf]
    %v166 = vld [vmem:[#allocation5 + $0xfc] sm:$0xf]
    %v167 = vld [vmem:[#allocation5 + $0x100] sm:$0xf]
    %v168 = vld [vmem:[#allocation5 + $0x104] sm:$0xf]
    %v169 = vld [vmem:[#allocation5 + $0x108] sm:$0xf]
    %v170 = vld [vmem:[#allocation5 + $0x10c] sm:$0xf]
    %v171 = vld [vmem:[#allocation5 + $0x110] sm:$0xf]
    %v172 = vld [vmem:[#allocation5 + $0x114] sm:$0xf]
    %v173 = vld [vmem:[#allocation5 + $0x118] sm:$0xf]
    %v174 = vld [vmem:[#allocation5 + $0x11c] sm:$0xf]
    %v175 = vld [vmem:[#allocation5 + $0x120] sm:$0xf]
    %v176 = vld [vmem:[#allocation5 + $0x124] sm:$0xf]
    %v177 = vld [vmem:[#allocation5 + $0x128] sm:$0xf]
    %v178 = vld [vmem:[#allocation5 + $0x12c] sm:$0xf]
    %v179 = vld [vmem:[#allocation5 + $0x130] sm:$0xf]
    %v180 = vld [vmem:[#allocation5 + $0x134] sm:$0xf]
    %v181 = vld [vmem:[#allocation5 + $0x138] sm:$0xf]
    %v182 = vld [vmem:[#allocation5 + $0x13c] sm:$0xf]
    %v183 = vld [vmem:[#allocation5 + $0x140] sm:$0xf]
    %v184 = vld [vmem:[#allocation5 + $0x144] sm:$0xf]
    %v185 = vld [vmem:[#allocation5 + $0x148] sm:$0xf]
    %v186 = vld [vmem:[#allocation5 + $0x14c] sm:$0xf]
    %v187 = vld [vmem:[#allocation5 + $0x150] sm:$0xf]
    %v188 = vld [vmem:[#allocation5 + $0x154] sm:$0xf]
    %v189 = vld [vmem:[#allocation5 + $0x158] sm:$0xf]
    %v190 = vld [vmem:[#allocation5 + $0x15c] sm:$0xf]
    %v191 = vld [vmem:[#allocation5 + $0x160] sm:$0xf]
    %v192 = vld [vmem:[#allocation5 + $0x164] sm:$0xf]
    %v193 = vld [vmem:[#allocation5 + $0x168] sm:$0xf]
    %v194 = vld [vmem:[#allocation5 + $0x16c] sm:$0xf]
    %v195 = vld [vmem:[#allocation5 + $0x170] sm:$0xf]
    %v196 = vld [vmem:[#allocation5 + $0x174] sm:$0xf]
    %v197 = vld [vmem:[#allocation5 + $0x178] sm:$0xf]
    %v198 = vld [vmem:[#allocation5 + $0x17c] sm:$0xf]
    %v199 = vld [vmem:[#allocation5 + $0x180] sm:$0xf]
    %v200 = vld [vmem:[#allocation5 + $0x184] sm:$0xf]
    %v201 = vld [vmem:[#allocation5 + $0x188] sm:$0xf]
    %v202 = vld [vmem:[#allocation5 + $0x18c] sm:$0xf]
    %v203 = vld [vmem:[#allocation5 + $0x190] sm:$0xf]
    %v204 = vld [vmem:[#allocation5 + $0x194] sm:$0xf]
    %v205 = vld [vmem:[#allocation5 + $0x198] sm:$0xf]
    %v206 = vld [vmem:[#allocation5 + $0x19c] sm:$0xf]
    %v207 = vld [vmem:[#allocation5 + $0x1a0] sm:$0xf]
    %v208 = vld [vmem:[#allocation5 + $0x1a4] sm:$0xf]
    %v209 = vld [vmem:[#allocation5 + $0x1a8] sm:$0xf]
    %v210 = vld [vmem:[#allocation5 + $0x1ac] sm:$0xf]
    %v211 = vld [vmem:[#allocation5 + $0x1b0] sm:$0xf]
    %v212 = vld [vmem:[#allocation5 + $0x1b4] sm:$0xf]
    %v213 = vld [vmem:[#allocation5 + $0x1b8] sm:$0xf]
    %v214 = vld [vmem:[#allocation5 + $0x1bc] sm:$0xf]
    %v215 = vld [vmem:[#allocation5 + $0x1c0] sm:$0xf]
    %v216 = vld [vmem:[#allocation5 + $0x1c4] sm:$0xf]
    %v217 = vld [vmem:[#allocation5 + $0x1c8] sm:$0xf]
    %v218 = vld [vmem:[#allocation5 + $0x1cc] sm:$0xf]
    %v219 = vld [vmem:[#allocation5 + $0x1d0] sm:$0xf]
    %v220 = vld [vmem:[#allocation5 + $0x1d4] sm:$0xf]
    %v221 = vld [vmem:[#allocation5 + $0x1d8] sm:$0xf]
    %v222 = vld [vmem:[#allocation5 + $0x1dc] sm:$0xf]
    %v223 = vld [vmem:[#allocation5 + $0x1e0] sm:$0xf]
    %v224 = vld [vmem:[#allocation5 + $0x1e4] sm:$0xf]
    %v225 = vld [vmem:[#allocation5 + $0x1e8] sm:$0xf]
    %v226 = vld [vmem:[#allocation5 + $0x1ec] sm:$0xf]
    %v227 = vld [vmem:[#allocation5 + $0x1f0] sm:$0xf]
    %v228 = vld [vmem:[#allocation5 + $0x1f4] sm:$0xf]
    %v229 = vld [vmem:[#allocation5 + $0x1f8] sm:$0xf]
    %v230 = vld [vmem:[#allocation5 + $0x1fc] sm:$0xf]
    %v231 = vld [vmem:[%s2] sm:$0x1]
    %v233 = vlaneseq
    %v234 = vshrl.u32 %v233, 7
    %v235 = vsub.s32 0, %v234
    %v236 = vrot.slane %v231, %v235
    %v366 = vunpack.c.l.b16 %v103
    %v367 = vunpack.c.l.b16 %v104
    %v368 = vunpack.c.l.b16 %v105
    %v369 = vunpack.c.l.b16 %v106
    %v370 = vunpack.c.l.b16 %v107
    %v371 = vunpack.c.l.b16 %v108
    %v372 = vunpack.c.l.b16 %v109
    %v373 = vunpack.c.l.b16 %v110
    %v374 = vunpack.c.l.b16 %v111
    %v375 = vunpack.c.l.b16 %v112
    %v376 = vunpack.c.l.b16 %v113
    %v377 = vunpack.c.l.b16 %v114
    %v378 = vunpack.c.l.b16 %v115
    %v379 = vunpack.c.l.b16 %v116
    %v380 = vunpack.c.l.b16 %v117
    %v381 = vunpack.c.l.b16 %v118
    %v382 = vunpack.c.l.b16 %v119
    %v383 = vunpack.c.l.b16 %v120
    %v384 = vunpack.c.l.b16 %v121
    %v385 = vunpack.c.l.b16 %v122
    %v386 = vunpack.c.l.b16 %v123
    %v387 = vunpack.c.l.b16 %v124
    %v388 = vunpack.c.l.b16 %v125
    %v389 = vunpack.c.l.b16 %v126
    %v390 = vunpack.c.l.b16 %v127
    %v391 = vunpack.c.l.b16 %v128
    %v392 = vunpack.c.l.b16 %v129
    %v393 = vunpack.c.l.b16 %v130
    %v394 = vunpack.c.l.b16 %v131
    %v395 = vunpack.c.l.b16 %v132
    %v396 = vunpack.c.l.b16 %v133
    %v397 = vunpack.c.l.b16 %v134
    %v398 = vunpack.c.l.b16 %v135
    %v399 = vunpack.c.l.b16 %v136
    %v400 = vunpack.c.l.b16 %v137
    %v401 = vunpack.c.l.b16 %v138
    %v402 = vunpack.c.l.b16 %v139
    %v403 = vunpack.c.l.b16 %v140
    %v404 = vunpack.c.l.b16 %v141
    %v405 = vunpack.c.l.b16 %v142
    %v406 = vunpack.c.l.b16 %v143
    %v407 = vunpack.c.l.b16 %v144
    %v408 = vunpack.c.l.b16 %v145
    %v409 = vunpack.c.l.b16 %v146
    %v410 = vunpack.c.l.b16 %v147
    %v411 = vunpack.c.l.b16 %v148
    %v412 = vunpack.c.l.b16 %v149
    %v413 = vunpack.c.l.b16 %v150
    %v414 = vunpack.c.l.b16 %v151
    %v415 = vunpack.c.l.b16 %v152
    %v416 = vunpack.c.l.b16 %v153
    %v417 = vunpack.c.l.b16 %v154
    %v418 = vunpack.c.l.b16 %v155
    %v419 = vunpack.c.l.b16 %v156
    %v420 = vunpack.c.l.b16 %v157
    %v421 = vunpack.c.l.b16 %v158
    %v422 = vunpack.c.l.b16 %v159
    %v423 = vunpack.c.l.b16 %v160
    %v424 = vunpack.c.l.b16 %v161
    %v425 = vunpack.c.l.b16 %v162
    %v426 = vunpack.c.l.b16 %v163
    %v427 = vunpack.c.l.b16 %v164
    %v428 = vunpack.c.l.b16 %v165
    %v429 = vunpack.c.l.b16 %v166
    %v430 = vunpack.c.l.b16 %v167
    %v431 = vunpack.c.l.b16 %v168
    %v432 = vunpack.c.l.b16 %v169
    %v433 = vunpack.c.l.b16 %v170
    %v434 = vunpack.c.l.b16 %v171
    %v435 = vunpack.c.l.b16 %v172
    %v436 = vunpack.c.l.b16 %v173
    %v437 = vunpack.c.l.b16 %v174
    %v438 = vunpack.c.l.b16 %v175
    %v439 = vunpack.c.l.b16 %v176
    %v440 = vunpack.c.l.b16 %v177
    %v441 = vunpack.c.l.b16 %v178
    %v442 = vunpack.c.l.b16 %v179
    %v443 = vunpack.c.l.b16 %v180
    %v444 = vunpack.c.l.b16 %v181
    %v445 = vunpack.c.l.b16 %v182
    %v446 = vunpack.c.l.b16 %v183
    %v447 = vunpack.c.l.b16 %v184
    %v448 = vunpack.c.l.b16 %v185
    %v449 = vunpack.c.l.b16 %v186
    %v450 = vunpack.c.l.b16 %v187
    %v451 = vunpack.c.l.b16 %v188
    %v452 = vunpack.c.l.b16 %v189
    %v453 = vunpack.c.l.b16 %v190
    %v454 = vunpack.c.l.b16 %v191
    %v455 = vunpack.c.l.b16 %v192
    %v456 = vunpack.c.l.b16 %v193
    %v457 = vunpack.c.l.b16 %v194
    %v458 = vunpack.c.l.b16 %v195
    %v459 = vunpack.c.l.b16 %v196
    %v460 = vunpack.c.l.b16 %v197
    %v461 = vunpack.c.l.b16 %v198
    %v462 = vunpack.c.l.b16 %v199
    %v463 = vunpack.c.l.b16 %v200
    %v464 = vunpack.c.l.b16 %v201
    %v465 = vunpack.c.l.b16 %v202
    %v466 = vunpack.c.l.b16 %v203
    %v467 = vunpack.c.l.b16 %v204
    %v468 = vunpack.c.l.b16 %v205
    %v469 = vunpack.c.l.b16 %v206
    %v470 = vunpack.c.l.b16 %v207
    %v471 = vunpack.c.l.b16 %v208
    %v472 = vunpack.c.l.b16 %v209
    %v473 = vunpack.c.l.b16 %v210
    %v474 = vunpack.c.l.b16 %v211
    %v475 = vunpack.c.l.b16 %v212
    %v476 = vunpack.c.l.b16 %v213
    %v477 = vunpack.c.l.b16 %v214
    %v478 = vunpack.c.l.b16 %v215
    %v479 = vunpack.c.l.b16 %v216
    %v480 = vunpack.c.l.b16 %v217
    %v481 = vunpack.c.l.b16 %v218
    %v482 = vunpack.c.l.b16 %v219
    %v483 = vunpack.c.l.b16 %v220
    %v484 = vunpack.c.l.b16 %v221
    %v485 = vunpack.c.l.b16 %v222
    %v486 = vunpack.c.l.b16 %v223
    %v487 = vunpack.c.l.b16 %v224
    %v488 = vunpack.c.l.b16 %v225
    %v489 = vunpack.c.l.b16 %v226
    %v490 = vunpack.c.l.b16 %v227
    %v491 = vunpack.c.l.b16 %v228
    %v492 = vunpack.c.l.b16 %v229
    %v493 = vunpack.c.l.b16 %v230
    %v494 = vpack.c.b16 %v367, %v366
    %v495 = vpack.c.b16 %v369, %v368
    %v496 = vpack.c.b16 %v371, %v370
    %v497 = vpack.c.b16 %v373, %v372
    %v498 = vpack.c.b16 %v375, %v374
    %v499 = vpack.c.b16 %v377, %v376
    %v500 = vpack.c.b16 %v379, %v378
    %v501 = vpack.c.b16 %v381, %v380
    %v502 = vpack.c.b16 %v383, %v382
    %v503 = vpack.c.b16 %v385, %v384
    %v504 = vpack.c.b16 %v387, %v386
    %v505 = vpack.c.b16 %v389, %v388
    %v506 = vpack.c.b16 %v391, %v390
    %v507 = vpack.c.b16 %v393, %v392
    %v508 = vpack.c.b16 %v395, %v394
    %v509 = vpack.c.b16 %v397, %v396
    %v510 = vpack.c.b16 %v399, %v398
    %v511 = vpack.c.b16 %v401, %v400
    %v512 = vpack.c.b16 %v403, %v402
    %v513 = vpack.c.b16 %v405, %v404
    %v514 = vpack.c.b16 %v407, %v406
    %v515 = vpack.c.b16 %v409, %v408
    %v516 = vpack.c.b16 %v411, %v410
    %v517 = vpack.c.b16 %v413, %v412
    %v518 = vpack.c.b16 %v415, %v414
    %v519 = vpack.c.b16 %v417, %v416
    %v520 = vpack.c.b16 %v419, %v418
    %v521 = vpack.c.b16 %v421, %v420
    %v522 = vpack.c.b16 %v423, %v422
    %v523 = vpack.c.b16 %v425, %v424
    %v524 = vpack.c.b16 %v427, %v426
    %v525 = vpack.c.b16 %v429, %v428
    %v526 = vpack.c.b16 %v431, %v430
    %v527 = vpack.c.b16 %v433, %v432
    %v528 = vpack.c.b16 %v435, %v434
    %v529 = vpack.c.b16 %v437, %v436
    %v530 = vpack.c.b16 %v439, %v438
    %v531 = vpack.c.b16 %v441, %v440
    %v532 = vpack.c.b16 %v443, %v442
    %v533 = vpack.c.b16 %v445, %v444
    %v534 = vpack.c.b16 %v447, %v446
    %v535 = vpack.c.b16 %v449, %v448
    %v536 = vpack.c.b16 %v451, %v450
    %v537 = vpack.c.b16 %v453, %v452
    %v538 = vpack.c.b16 %v455, %v454
    %v539 = vpack.c.b16 %v457, %v456
    %v540 = vpack.c.b16 %v459, %v458
    %v541 = vpack.c.b16 %v461, %v460
    %v542 = vpack.c.b16 %v463, %v462
    %v543 = vpack.c.b16 %v465, %v464
    %v544 = vpack.c.b16 %v467, %v466
    %v545 = vpack.c.b16 %v469, %v468
    %v546 = vpack.c.b16 %v471, %v470
    %v547 = vpack.c.b16 %v473, %v472
    %v548 = vpack.c.b16 %v475, %v474
    %v549 = vpack.c.b16 %v477, %v476
    %v550 = vpack.c.b16 %v479, %v478
    %v551 = vpack.c.b16 %v481, %v480
    %v552 = vpack.c.b16 %v483, %v482
    %v553 = vpack.c.b16 %v485, %v484
    %v554 = vpack.c.b16 %v487, %v486
    %v555 = vpack.c.b16 %v489, %v488
    %v556 = vpack.c.b16 %v491, %v490
    %v557 = vpack.c.b16 %v493, %v492
    %622 = vmatprep.subr.bf16.mxu0 0
    %623 = vmatpush1.bf16.msra.mxu0 %v501
    %624 = vmatprep.subr.bf16.mxu0 0
    %625 = vmatpush1.bf16.msra.mxu0 %v500
    %626 = vmatprep.subr.bf16.mxu0 0
    %627 = vmatpush1.bf16.msra.mxu0 %v499
    %628 = vmatprep.subr.bf16.mxu0 0
    %629 = vmatpush1.bf16.msra.mxu0 %v498
    %630 = vmatprep.subr.bf16.mxu0 0
    %631 = vmatpush1.bf16.msra.mxu0 %v497
    %632 = vmatprep.subr.bf16.mxu0 0
    %633 = vmatpush1.bf16.msra.mxu0 %v496
    %634 = vmatprep.subr.bf16.mxu0 0
    %635 = vmatpush1.bf16.msra.mxu0 %v495
    %636 = vmatprep.subr.bf16.mxu0 0
    %637 = vmatpush1.bf16.msra.mxu0 %v494
    %638 = vmatprep.subr.bf16.mxu0 0
    %639 = vmatpush2.bf16.msra.mxu0 %v509
    %640 = vmatprep.subr.bf16.mxu0 0
    %641 = vmatpush2.bf16.msra.mxu0 %v508
    %642 = vmatprep.subr.bf16.mxu0 0
    %643 = vmatpush2.bf16.msra.mxu0 %v507
    %644 = vmatprep.subr.bf16.mxu0 0
    %645 = vmatpush2.bf16.msra.mxu0 %v506
    %646 = vmatprep.subr.bf16.mxu0 0
    %647 = vmatpush2.bf16.msra.mxu0 %v505
    %648 = vmatprep.subr.bf16.mxu0 0
    %649 = vmatpush2.bf16.msra.mxu0 %v504
    %650 = vmatprep.subr.bf16.mxu0 0
    %651 = vmatpush2.bf16.msra.mxu0 %v503
    %652 = vmatprep.subr.bf16.mxu0 0
    %653 = vmatpush2.bf16.msra.mxu0 %v502
    %654 = vmatprep.mubr.bf16.mxu0 %v96
    %655 = vmatmul.mubr.bf16.gmra.mxu0 %v95
    %v656 = vpop.f32.mrf.mxu0
    %v657 = vadd.f32 %v236, %v656
    %v658 = vpop.f32.mrf.mxu0
    %v659 = vpop.f32.mrf.mxu0
    %v660 = vpop.f32.mrf.mxu0
    %661 = vdwg.mxu0
    %662 = vmatprep.subr.bf16.mxu0 0
    %663 = vmatpush1.bf16.msra.mxu0 %v517
    %664 = vmatprep.subr.bf16.mxu0 0
    %665 = vmatpush1.bf16.msra.mxu0 %v516
    %666 = vmatprep.subr.bf16.mxu0 0
    %667 = vmatpush1.bf16.msra.mxu0 %v515
    %668 = vmatprep.subr.bf16.mxu0 0
    %669 = vmatpush1.bf16.msra.mxu0 %v514
    %670 = vmatprep.subr.bf16.mxu0 0
    %671 = vmatpush1.bf16.msra.mxu0 %v513
    %672 = vmatprep.subr.bf16.mxu0 0
    %673 = vmatpush1.bf16.msra.mxu0 %v512
    %674 = vmatprep.subr.bf16.mxu0 0
    %675 = vmatpush1.bf16.msra.mxu0 %v511
    %676 = vmatprep.subr.bf16.mxu0 0
    %677 = vmatpush1.bf16.msra.mxu0 %v510
    %678 = vmatprep.subr.bf16.mxu0 0
    %679 = vmatpush2.bf16.msra.mxu0 %v525
    %680 = vmatprep.subr.bf16.mxu0 0
    %681 = vmatpush2.bf16.msra.mxu0 %v524
    %682 = vmatprep.subr.bf16.mxu0 0
    %683 = vmatpush2.bf16.msra.mxu0 %v523
    %684 = vmatprep.subr.bf16.mxu0 0
    %685 = vmatpush2.bf16.msra.mxu0 %v522
    %686 = vmatprep.subr.bf16.mxu0 0
    %687 = vmatpush2.bf16.msra.mxu0 %v521
    %688 = vmatprep.subr.bf16.mxu0 0
    %689 = vmatpush2.bf16.msra.mxu0 %v520
    %690 = vmatprep.subr.bf16.mxu0 0
    %691 = vmatpush2.bf16.msra.mxu0 %v519
    %692 = vmatprep.subr.bf16.mxu0 0
    %693 = vmatpush2.bf16.msra.mxu0 %v518
    %694 = vmatprep.mubr.bf16.mxu0 %v98
    %695 = vmatmul.mubr.bf16.gmra.mxu0 %v97
    %v696 = vpop.f32.mrf.mxu0
    %v697 = vadd.f32 %v657, %v696
    %v698 = vpop.f32.mrf.mxu0
    %v699 = vpop.f32.mrf.mxu0
    %v700 = vpop.f32.mrf.mxu0
    %701 = vdwg.mxu0
    %702 = vmatprep.subr.bf16.mxu0 0
    %703 = vmatpush1.bf16.msra.mxu0 %v533
    %704 = vmatprep.subr.bf16.mxu0 0
    %705 = vmatpush1.bf16.msra.mxu0 %v532
    %706 = vmatprep.subr.bf16.mxu0 0
    %707 = vmatpush1.bf16.msra.mxu0 %v531
    %708 = vmatprep.subr.bf16.mxu0 0
    %709 = vmatpush1.bf16.msra.mxu0 %v530
    %710 = vmatprep.subr.bf16.mxu0 0
    %711 = vmatpush1.bf16.msra.mxu0 %v529
    %712 = vmatprep.subr.bf16.mxu0 0
    %713 = vmatpush1.bf16.msra.mxu0 %v528
    %714 = vmatprep.subr.bf16.mxu0 0
    %715 = vmatpush1.bf16.msra.mxu0 %v527
    %716 = vmatprep.subr.bf16.mxu0 0
    %717 = vmatpush1.bf16.msra.mxu0 %v526
    %718 = vmatprep.subr.bf16.mxu0 0
    %719 = vmatpush2.bf16.msra.mxu0 %v541
    %720 = vmatprep.subr.bf16.mxu0 0
    %721 = vmatpush2.bf16.msra.mxu0 %v540
    %722 = vmatprep.subr.bf16.mxu0 0
    %723 = vmatpush2.bf16.msra.mxu0 %v539
    %724 = vmatprep.subr.bf16.mxu0 0
    %725 = vmatpush2.bf16.msra.mxu0 %v538
    %726 = vmatprep.subr.bf16.mxu0 0
    %727 = vmatpush2.bf16.msra.mxu0 %v537
    %728 = vmatprep.subr.bf16.mxu0 0
    %729 = vmatpush2.bf16.msra.mxu0 %v536
    %730 = vmatprep.subr.bf16.mxu0 0
    %731 = vmatpush2.bf16.msra.mxu0 %v535
    %732 = vmatprep.subr.bf16.mxu0 0
    %733 = vmatpush2.bf16.msra.mxu0 %v534
    %734 = vmatprep.mubr.bf16.mxu0 %v100
    %735 = vmatmul.mubr.bf16.gmra.mxu0 %v99
    %v736 = vpop.f32.mrf.mxu0
    %v737 = vadd.f32 %v697, %v736
    %v738 = vpop.f32.mrf.mxu0
    %v739 = vpop.f32.mrf.mxu0
    %v740 = vpop.f32.mrf.mxu0
    %741 = vdwg.mxu0
    %742 = vmatprep.subr.bf16.mxu0 0
    %743 = vmatpush1.bf16.msra.mxu0 %v549
    %744 = vmatprep.subr.bf16.mxu0 0
    %745 = vmatpush1.bf16.msra.mxu0 %v548
    %746 = vmatprep.subr.bf16.mxu0 0
    %747 = vmatpush1.bf16.msra.mxu0 %v547
    %748 = vmatprep.subr.bf16.mxu0 0
    %749 = vmatpush1.bf16.msra.mxu0 %v546
    %750 = vmatprep.subr.bf16.mxu0 0
    %751 = vmatpush1.bf16.msra.mxu0 %v545
    %752 = vmatprep.subr.bf16.mxu0 0
    %753 = vmatpush1.bf16.msra.mxu0 %v544
    %754 = vmatprep.subr.bf16.mxu0 0
    %755 = vmatpush1.bf16.msra.mxu0 %v543
    %756 = vmatprep.subr.bf16.mxu0 0
    %757 = vmatpush1.bf16.msra.mxu0 %v542
    %758 = vmatprep.subr.bf16.mxu0 0
    %759 = vmatpush2.bf16.msra.mxu0 %v557
    %760 = vmatprep.subr.bf16.mxu0 0
    %761 = vmatpush2.bf16.msra.mxu0 %v556
    %762 = vmatprep.subr.bf16.mxu0 0
    %763 = vmatpush2.bf16.msra.mxu0 %v555
    %764 = vmatprep.subr.bf16.mxu0 0
    %765 = vmatpush2.bf16.msra.mxu0 %v554
    %766 = vmatprep.subr.bf16.mxu0 0
    %767 = vmatpush2.bf16.msra.mxu0 %v553
    %768 = vmatprep.subr.bf16.mxu0 0
    %769 = vmatpush2.bf16.msra.mxu0 %v552
    %770 = vmatprep.subr.bf16.mxu0 0
    %771 = vmatpush2.bf16.msra.mxu0 %v551
    %772 = vmatprep.subr.bf16.mxu0 0
    %773 = vmatpush2.bf16.msra.mxu0 %v550
    %774 = vmatprep.mubr.bf16.mxu0 %v102
    %775 = vmatmul.mubr.bf16.gmra.mxu0 %v101
    %v776 = vpop.f32.mrf.mxu0
    %v777 = vadd.f32 %v737, %v776
    %v778 = vpop.f32.mrf.mxu0
    %v779 = vpop.f32.mrf.mxu0
    %v780 = vpop.f32.mrf.mxu0
    %781 = vdwg.mxu0
    %782 = vst [vmem:[#allocation7] sm:$0x3] %v777
    %v783 = vmul.f32 %v777, 0.5
    %v784 = vmul.f32 %v783, 1.442695
    %v785 = vpow.pop %v784
    %v786 = vld [vmem:[%s3] sm:$0x3]
    %788 = vrot.lane.b32.xlu0 %v777, 32
    %v789 = vpop.permute.xlu0 %788
    %791 = vrot.lane.b32.xlu0 %v777, 64
    %v792 = vpop.permute.xlu0 %791
    %794 = vrot.lane.b32.xlu0 %v777, 96
    %v795 = vpop.permute.xlu0 %794
    %vm797 = vcmask 261120
    %v798 = vsel %vm797, %v777, %v789
    %vm799 = vcmask 523264
    %v800 = vsel %vm799, %v798, %v792
    %vm801 = vcmask 785408
    %v802 = vsel %vm801, %v800, %v795
    %804 = vrot.lane.b32.xlu0 %v785, 96
    %v805 = vpop.permute.xlu0 %804
    %807 = vrot.lane.b32.xlu0 %v785, 32
    %v808 = vpop.permute.xlu0 %807
    %810 = vrot.lane.b32.xlu0 %v785, 64
    %v811 = vpop.permute.xlu0 %810
    %v813 = vsel %vm797, %v805, %v785
    %v814 = vsel %vm799, %v813, %v808
    %v815 = vsel %vm801, %v814, %v811
    %v816 = vmul.f32 %v786, %v815
    %v817 = vadd.f32 %v802, %v816
    %818 = vst [vmem:[#allocation8] sm:$0x3] %v817
    %v819 = vmul.f32 %v785, %v785
    %v820 = vmul.f32 %v777, %v777
    %822 = vrot.lane.b32.xlu0 %v819, 96
    %v823 = vpop.permute.xlu0 %822
    %v825 = vadd.f32 %v820, %v823
    %v826 = vsub.f32 %v825, %v795
    %v827 = vsub.f32 %v826, 1.0
    %vm828 = vcmask 254976
    %v829 = vsel %vm828, %v827, 0.0
    %830 = vadd.xlane.f32.xlu0 %v829
    %v831 = vpop.xlane.xlu0 %830
    %v832 = vmul.f32 %v831, 0.5
    %vm833 = vcmask 1024
    %834 = vst.msk [vmem:[%s6] sm:$0x3] %vm833, %v832
    // Predicated region
    $region26: #{tpu_custom_call.1} parent=1 // pred_check
      _
    $region27: #{tpu_custom_call.1} parent=1 // pred_check_branch
      %836 = sbr.rel (0) target = $region29
    $region28: #{tpu_custom_call.1} parent=1 // pred_region
      %s838 = ssub.s32 32, 32
      %839 = vsyncadd [#allocation4], %s838
      %s841 = sshll.u32 [#allocation7], 4
      %s842 = int_to_ptr.vmem [resolvable:$true] %s841
      %844 = dma.vmem_to_hbm [thread:$0]  %s842, 32, %s4, [#allocation4]
    $region29: #{tpu_custom_call.1} parent=1 // pred_fallthru
      _
    // Predicated region
    $region30: #{tpu_custom_call.1} parent=1 // pred_check
      _
    $region31: #{tpu_custom_call.1} parent=1 // pred_check_branch
      %846 = sbr.rel (0) target = $region33
    $region32: #{tpu_custom_call.1} parent=1 // pred_region
      %s848 = ssub.s32 32, 32
      %849 = vsyncadd [#allocation9], %s848
      %s851 = sshll.u32 [#allocation8], 4
      %s852 = int_to_ptr.vmem [resolvable:$true] %s851
      %854 = dma.vmem_to_hbm [thread:$0]  %s852, 32, %s5, [#allocation9]
    $region33: #{tpu_custom_call.1} parent=1 // pred_fallthru
      _
    // Predicated region
    $region34: #{tpu_custom_call.1} parent=1 // pred_check
      _
    $region35: #{tpu_custom_call.1} parent=1 // pred_check_branch
      %856 = sbr.rel (0) target = $region37
    $region36: #{tpu_custom_call.1} parent=1 // pred_region
      _
    $region37: #{tpu_custom_call.1} parent=1 // pred_fallthru
      _
    // Predicated region
    $region38: #{tpu_custom_call.1} parent=1 // pred_check
      _
    $region39: #{tpu_custom_call.1} parent=1 // pred_check_branch
      %858 = sbr.rel (0) target = $region41
    $region40: #{tpu_custom_call.1} parent=1 // pred_region
      %859 = dma.done [#allocation4], 32
    $region41: #{tpu_custom_call.1} parent=1 // pred_fallthru
      _
    // Predicated region
    $region42: #{tpu_custom_call.1} parent=1 // pred_check
      _
    $region43: #{tpu_custom_call.1} parent=1 // pred_check_branch
      %861 = sbr.rel (0) target = $region45
    $region44: #{tpu_custom_call.1} parent=1 // pred_region
      %862 = dma.done [#allocation9], 32
    $region45: #{tpu_custom_call.1} parent=1 // pred_fallthru
      _
    // Predicated region
    $region46: #{tpu_custom_call.1} parent=1 // pred_check
      _
    $region47: #{tpu_custom_call.1} parent=1 // pred_check_branch
      %864 = sbr.rel (0) target = $region49
    $region48: #{tpu_custom_call.1} parent=1 // pred_region
      _
    $region49: #{tpu_custom_call.1} parent=1 // pred_fallthru
      _
    %865 = vsyncpa [#allocation3], 1
    %866 = vsyncpa [#allocation6], 1
    %867 = vsyncpa [#allocation4], 1
    %868 = vsyncpa [#allocation9], 1

// kernel: tpu_custom_call.1
$region0: #{tpu_custom_call.1}
  #allocation0 [shape = 'u32[]', space=smem, size = 0x4, offset = 0x4, fixed_abs, tag = 'smem constant byte address 0x4 - core index']
  #allocation1 [shape = 'u32[144,128]{1,0:T(1,128)}', space=vmem, size = 0x12000, scoped, tag = 'internal scratch']
  %s0 = inlined_call_operand.hbm [shape: f32[2,1024], index: 0, kind: input, shape index: {}]
  %s1 = inlined_call_operand.hbm [shape: bf16[1024,128], index: 1, kind: input, shape index: {}]
  %s2 = inlined_call_operand.vmem [shape: f32[1,128], index: 2, kind: input, shape index: {}]
  %s3 = inlined_call_operand.vmem [shape: f32[2,128], index: 3, kind: input, shape index: {}]
  %s4 = inlined_call_operand.hbm [shape: f32[2,128], index: 4, kind: output, shape index: {0}]
  %s5 = inlined_call_operand.hbm [shape: f32[2,128], index: 5, kind: output, shape index: {1}]
  %s6 = inlined_call_operand.vmem [shape: f32[2,1], index: 6, kind: output, shape index: {2}]
  %7 = xla_tuple %s4, %s5, %s6
  %s8 = sld [smem:[#allocation0]]
  $region50: #{tpu_custom_call.1} parent=0
    _
  %s10 = ssub.s32 1, %s8
  %s11 = scalar_select 0, %s10, %s8
  $region1: #{tpu_custom_call.1} parent=0
    #allocation2 [shape = 'u8[8192]{0}', space=vmem, size = 0x2000, scoped, tag = 'input window, operand 0, single buffered']
    #allocation3 [shape = 's32[1]{0}', space=sflag, size = 0x4, scoped, tag = 'scoped memory for tpu_custom_call.1']
    #allocation4 [shape = 's32[1]{0}', space=sflag, size = 0x4, scoped, tag = 'scoped memory for tpu_custom_call.1']
    #allocation5 [shape = 'u8[262144]{0}', space=vmem, size = 0x40000, scoped, tag = 'input window, operand 1, single buffered']
    #allocation6 [shape = 's32[1]{0}', space=sflag, size = 0x4, scoped, tag = 'scoped memory for tpu_custom_call.1']
    #allocation7 [shape = 'u8[1024]{0}', space=vmem, size = 0x400, scoped, tag = 'output window, operand 0, single buffered']
    #allocation8 [shape = 'u8[1024]{0}', space=vmem, size = 0x400, scoped, tag = 'output window, operand 1, single buffered']
    #allocation9 [shape = 's32[1]{0}', space=sflag, size = 0x4, scoped, tag = 'scoped memory for tpu_custom_call.1']
    %12 = vsyncpa [#allocation3], 0
    %13 = vsyncpa [#allocation6], 0
    %14 = vsyncpa [#allocation4], 0
    %15 = vsyncpa [#allocation9], 0
    // Predicated region
    $region2: #{tpu_custom_call.1} parent=1 // pred_check
      _
    $region3: #{tpu_custom_call.1} parent=1 // pred_check_branch
      %17 = sbr.rel (0) target = $region5
    $region4: #{tpu_custom_call.1} parent=1 // pred_region
      %s19 = ssub.s32 256, 256
      %20 = vsyncadd [#allocation3], %s19
      %s22 = sshll.u32 [#allocation2], 4
      %s23 = int_to_ptr.vmem [resolvable:$true] %s22
      %25 = dma.hbm_to_vmem [thread:$0]  %s0, 256, %s23, [#allocation3]
    $region5: #{tpu_custom_call.1} parent=1 // pred_fallthru
      _
    // Predicated region
    $region6: #{tpu_custom_call.1} parent=1 // pred_check
      _
    $region7: #{tpu_custom_call.1} parent=1 // pred_check_branch
      %27 = sbr.rel (0) target = $region9
    $region8: #{tpu_custom_call.1} parent=1 // pred_region
      %s29 = ssub.s32 8192, 8192
      %30 = vsyncadd [#allocation6], %s29
      %s31 = sshll.u32 [#allocation5], 4
      %s32 = int_to_ptr.vmem [resolvable:$true] %s31
      %37 = dma.hbm_to_vmem [thread:$0]  %s1, 8192, %s32, [#allocation6], 64, 64, 4
    $region9: #{tpu_custom_call.1} parent=1 // pred_fallthru
      _
    // Predicated region
    $region10: #{tpu_custom_call.1} parent=1 // pred_check
      _
    $region11: #{tpu_custom_call.1} parent=1 // pred_check_branch
      %39 = sbr.rel (0) target = $region13
    $region12: #{tpu_custom_call.1} parent=1 // pred_region
      _
    $region13: #{tpu_custom_call.1} parent=1 // pred_fallthru
      _
    // Predicated region
    $region14: #{tpu_custom_call.1} parent=1 // pred_check
      _
    $region15: #{tpu_custom_call.1} parent=1 // pred_check_branch
      %41 = sbr.rel (0) target = $region17
    $region16: #{tpu_custom_call.1} parent=1 // pred_region
      _
    $region17: #{tpu_custom_call.1} parent=1 // pred_fallthru
      _
    // Predicated region
    $region18: #{tpu_custom_call.1} parent=1 // pred_check
      _
    $region19: #{tpu_custom_call.1} parent=1 // pred_check_branch
      %43 = sbr.rel (0) target = $region21
    $region20: #{tpu_custom_call.1} parent=1 // pred_region
      %44 = dma.done [#allocation3], 256
    $region21: #{tpu_custom_call.1} parent=1 // pred_fallthru
      _
    // Predicated region
    $region22: #{tpu_custom_call.1} parent=1 // pred_check
      _
    $region23: #{tpu_custom_call.1} parent=1 // pred_check_branch
      %46 = sbr.rel (0) target = $region25
    $region24: #{tpu_custom_call.1} parent=1 // pred_region
      %47 = dma.done [#allocation6], 8192
    $region25: #{tpu_custom_call.1} parent=1 // pred_fallthru
      _
    %v49 = vld [vmem:[#allocation2] sm:$0xff]
    %v50 = vld [vmem:[#allocation2 + $0x8] sm:$0xff]
    %v53 = vcombine.high %v49, %v49
    %v55 = vunpack.c.l.s4 1983009808
    %v56 = vunpack.c.0.s8 %v55
    %v57 = vlaneseq
    %v58 = vshrl.u32 %v57, 7
    %v59 = vsub.s32 %v56, %v58
    %v60 = vrot.slane %v49, %v59
    %v62 = vunpack.c.l.s4 1983009808
    %v63 = vunpack.c.0.s8 %v62
    %v64 = vlaneseq
    %v65 = vshrl.u32 %v64, 7
    %v66 = vsub.s32 %v63, %v65
    %v67 = vrot.slane %v53, %v66
    %v68 = vcombine.high %v60, %v60
    %v69 = vcombine.high %v67, %v67
    %v70 = vcombine.high %v50, %v50
    %v72 = vunpack.c.l.s4 1983009808
    %v73 = vunpack.c.0.s8 %v72
    %v74 = vlaneseq
    %v75 = vshrl.u32 %v74, 7
    %v76 = vsub.s32 %v73, %v75
    %v77 = vrot.slane %v50, %v76
    %v79 = vunpack.c.l.s4 1983009808
    %v80 = vunpack.c.0.s8 %v79
    %v81 = vlaneseq
    %v82 = vshrl.u32 %v81, 7
    %v83 = vsub.s32 %v80, %v82
    %v84 = vrot.slane %v70, %v83
    %v85 = vcombine.high %v77, %v77
    %v86 = vcombine.high %v84, %v84
    %v95 = vpack.c.bf16 %v60, %v60
    %v96 = vpack.c.bf16 %v68, %v68
    %v97 = vpack.c.bf16 %v67, %v67
    %v98 = vpack.c.bf16 %v69, %v69
    %v99 = vpack.c.bf16 %v77, %v77
    %v100 = vpack.c.bf16 %v85, %v85
    %v101 = vpack.c.bf16 %v84, %v84
    %v102 = vpack.c.bf16 %v86, %v86
    %v103 = vld [vmem:[#allocation5] sm:$0xf]
    %v104 = vld [vmem:[#allocation5 + $0x4] sm:$0xf]
    %v105 = vld [vmem:[#allocation5 + $0x8] sm:$0xf]
    %v106 = vld [vmem:[#allocation5 + $0xc] sm:$0xf]
    %v107 = vld [vmem:[#allocation5 + $0x10] sm:$0xf]
    %v108 = vld [vmem:[#allocation5 + $0x14] sm:$0xf]
    %v109 = vld [vmem:[#allocation5 + $0x18] sm:$0xf]
    %v110 = vld [vmem:[#allocation5 + $0x1c] sm:$0xf]
    %v111 = vld [vmem:[#allocation5 + $0x20] sm:$0xf]
    %v112 = vld [vmem:[#allocation5 + $0x24] sm:$0xf]
    %v113 = vld [vmem:[#allocation5 + $0x28] sm:$0xf]
    %v114 = vld [vmem:[#allocation5 + $0x2c] sm:$0xf]
    %v115 = vld [vmem:[#allocation5 + $0x30] sm:$0xf]
    %v116 = vld [vmem:[#allocation5 + $0x34] sm:$0xf]
    %v117 = vld [vmem:[#allocation5 + $0x38] sm:$0xf]
    %v118 = vld [vmem:[#allocation5 + $0x3c] sm:$0xf]
    %v119 = vld [vmem:[#allocation5 + $0x40] sm:$0xf]
    %v120 = vld [vmem:[#allocation5 + $0x44] sm:$0xf]
    %v121 = vld [vmem:[#allocation5 + $0x48] sm:$0xf]
    %v122 = vld [vmem:[#allocation5 + $0x4c] sm:$0xf]
    %v123 = vld [vmem:[#allocation5 + $0x50] sm:$0xf]
    %v124 = vld [vmem:[#allocation5 + $0x54] sm:$0xf]
    %v125 = vld [vmem:[#allocation5 + $0x58] sm:$0xf]
    %v126 = vld [vmem:[#allocation5 + $0x5c] sm:$0xf]
    %v127 = vld [vmem:[#allocation5 + $0x60] sm:$0xf]
    %v128 = vld [vmem:[#allocation5 + $0x64] sm:$0xf]
    %v129 = vld [vmem:[#allocation5 + $0x68] sm:$0xf]
    %v130 = vld [vmem:[#allocation5 + $0x6c] sm:$0xf]
    %v131 = vld [vmem:[#allocation5 + $0x70] sm:$0xf]
    %v132 = vld [vmem:[#allocation5 + $0x74] sm:$0xf]
    %v133 = vld [vmem:[#allocation5 + $0x78] sm:$0xf]
    %v134 = vld [vmem:[#allocation5 + $0x7c] sm:$0xf]
    %v135 = vld [vmem:[#allocation5 + $0x80] sm:$0xf]
    %v136 = vld [vmem:[#allocation5 + $0x84] sm:$0xf]
    %v137 = vld [vmem:[#allocation5 + $0x88] sm:$0xf]
    %v138 = vld [vmem:[#allocation5 + $0x8c] sm:$0xf]
    %v139 = vld [vmem:[#allocation5 + $0x90] sm:$0xf]
    %v140 = vld [vmem:[#allocation5 + $0x94] sm:$0xf]
    %v141 = vld [vmem:[#allocation5 + $0x98] sm:$0xf]
    %v142 = vld [vmem:[#allocation5 + $0x9c] sm:$0xf]
    %v143 = vld [vmem:[#allocation5 + $0xa0] sm:$0xf]
    %v144 = vld [vmem:[#allocation5 + $0xa4] sm:$0xf]
    %v145 = vld [vmem:[#allocation5 + $0xa8] sm:$0xf]
    %v146 = vld [vmem:[#allocation5 + $0xac] sm:$0xf]
    %v147 = vld [vmem:[#allocation5 + $0xb0] sm:$0xf]
    %v148 = vld [vmem:[#allocation5 + $0xb4] sm:$0xf]
    %v149 = vld [vmem:[#allocation5 + $0xb8] sm:$0xf]
    %v150 = vld [vmem:[#allocation5 + $0xbc] sm:$0xf]
    %v151 = vld [vmem:[#allocation5 + $0xc0] sm:$0xf]
    %v152 = vld [vmem:[#allocation5 + $0xc4] sm:$0xf]
    %v153 = vld [vmem:[#allocation5 + $0xc8] sm:$0xf]
    %v154 = vld [vmem:[#allocation5 + $0xcc] sm:$0xf]
    %v155 = vld [vmem:[#allocation5 + $0xd0] sm:$0xf]
    %v156 = vld [vmem:[#allocation5 + $0xd4] sm:$0xf]
    %v157 = vld [vmem:[#allocation5 + $0xd8] sm:$0xf]
    %v158 = vld [vmem:[#allocation5 + $0xdc] sm:$0xf]
    %v159 = vld [vmem:[#allocation5 + $0xe0] sm:$0xf]
    %v160 = vld [vmem:[#allocation5 + $0xe4] sm:$0xf]
    %v161 = vld [vmem:[#allocation5 + $0xe8] sm:$0xf]
    %v162 = vld [vmem:[#allocation5 + $0xec] sm:$0xf]
    %v163 = vld [vmem:[#allocation5 + $0xf0] sm:$0xf]
    %v164 = vld [vmem:[#allocation5 + $0xf4] sm:$0xf]
    %v165 = vld [vmem:[#allocation5 + $0xf8] sm:$0xf]
    %v166 = vld [vmem:[#allocation5 + $0xfc] sm:$0xf]
    %v167 = vld [vmem:[#allocation5 + $0x100] sm:$0xf]
    %v168 = vld [vmem:[#allocation5 + $0x104] sm:$0xf]
    %v169 = vld [vmem:[#allocation5 + $0x108] sm:$0xf]
    %v170 = vld [vmem:[#allocation5 + $0x10c] sm:$0xf]
    %v171 = vld [vmem:[#allocation5 + $0x110] sm:$0xf]
    %v172 = vld [vmem:[#allocation5 + $0x114] sm:$0xf]
    %v173 = vld [vmem:[#allocation5 + $0x118] sm:$0xf]
    %v174 = vld [vmem:[#allocation5 + $0x11c] sm:$0xf]
    %v175 = vld [vmem:[#allocation5 + $0x120] sm:$0xf]
    %v176 = vld [vmem:[#allocation5 + $0x124] sm:$0xf]
    %v177 = vld [vmem:[#allocation5 + $0x128] sm:$0xf]
    %v178 = vld [vmem:[#allocation5 + $0x12c] sm:$0xf]
    %v179 = vld [vmem:[#allocation5 + $0x130] sm:$0xf]
    %v180 = vld [vmem:[#allocation5 + $0x134] sm:$0xf]
    %v181 = vld [vmem:[#allocation5 + $0x138] sm:$0xf]
    %v182 = vld [vmem:[#allocation5 + $0x13c] sm:$0xf]
    %v183 = vld [vmem:[#allocation5 + $0x140] sm:$0xf]
    %v184 = vld [vmem:[#allocation5 + $0x144] sm:$0xf]
    %v185 = vld [vmem:[#allocation5 + $0x148] sm:$0xf]
    %v186 = vld [vmem:[#allocation5 + $0x14c] sm:$0xf]
    %v187 = vld [vmem:[#allocation5 + $0x150] sm:$0xf]
    %v188 = vld [vmem:[#allocation5 + $0x154] sm:$0xf]
    %v189 = vld [vmem:[#allocation5 + $0x158] sm:$0xf]
    %v190 = vld [vmem:[#allocation5 + $0x15c] sm:$0xf]
    %v191 = vld [vmem:[#allocation5 + $0x160] sm:$0xf]
    %v192 = vld [vmem:[#allocation5 + $0x164] sm:$0xf]
    %v193 = vld [vmem:[#allocation5 + $0x168] sm:$0xf]
    %v194 = vld [vmem:[#allocation5 + $0x16c] sm:$0xf]
    %v195 = vld [vmem:[#allocation5 + $0x170] sm:$0xf]
    %v196 = vld [vmem:[#allocation5 + $0x174] sm:$0xf]
    %v197 = vld [vmem:[#allocation5 + $0x178] sm:$0xf]
    %v198 = vld [vmem:[#allocation5 + $0x17c] sm:$0xf]
    %v199 = vld [vmem:[#allocation5 + $0x180] sm:$0xf]
    %v200 = vld [vmem:[#allocation5 + $0x184] sm:$0xf]
    %v201 = vld [vmem:[#allocation5 + $0x188] sm:$0xf]
    %v202 = vld [vmem:[#allocation5 + $0x18c] sm:$0xf]
    %v203 = vld [vmem:[#allocation5 + $0x190] sm:$0xf]
    %v204 = vld [vmem:[#allocation5 + $0x194] sm:$0xf]
    %v205 = vld [vmem:[#allocation5 + $0x198] sm:$0xf]
    %v206 = vld [vmem:[#allocation5 + $0x19c] sm:$0xf]
    %v207 = vld [vmem:[#allocation5 + $0x1a0] sm:$0xf]
    %v208 = vld [vmem:[#allocation5 + $0x1a4] sm:$0xf]
    %v209 = vld [vmem:[#allocation5 + $0x1a8] sm:$0xf]
    %v210 = vld [vmem:[#allocation5 + $0x1ac] sm:$0xf]
    %v211 = vld [vmem:[#allocation5 + $0x1b0] sm:$0xf]
    %v212 = vld [vmem:[#allocation5 + $0x1b4] sm:$0xf]
    %v213 = vld [vmem:[#allocation5 + $0x1b8] sm:$0xf]
    %v214 = vld [vmem:[#allocation5 + $0x1bc] sm:$0xf]
    %v215 = vld [vmem:[#allocation5 + $0x1c0] sm:$0xf]
    %v216 = vld [vmem:[#allocation5 + $0x1c4] sm:$0xf]
    %v217 = vld [vmem:[#allocation5 + $0x1c8] sm:$0xf]
    %v218 = vld [vmem:[#allocation5 + $0x1cc] sm:$0xf]
    %v219 = vld [vmem:[#allocation5 + $0x1d0] sm:$0xf]
    %v220 = vld [vmem:[#allocation5 + $0x1d4] sm:$0xf]
    %v221 = vld [vmem:[#allocation5 + $0x1d8] sm:$0xf]
    %v222 = vld [vmem:[#allocation5 + $0x1dc] sm:$0xf]
    %v223 = vld [vmem:[#allocation5 + $0x1e0] sm:$0xf]
    %v224 = vld [vmem:[#allocation5 + $0x1e4] sm:$0xf]
    %v225 = vld [vmem:[#allocation5 + $0x1e8] sm:$0xf]
    %v226 = vld [vmem:[#allocation5 + $0x1ec] sm:$0xf]
    %v227 = vld [vmem:[#allocation5 + $0x1f0] sm:$0xf]
    %v228 = vld [vmem:[#allocation5 + $0x1f4] sm:$0xf]
    %v229 = vld [vmem:[#allocation5 + $0x1f8] sm:$0xf]
    %v230 = vld [vmem:[#allocation5 + $0x1fc] sm:$0xf]
    %v231 = vld [vmem:[%s2] sm:$0x1]
    %v233 = vlaneseq
    %v234 = vshrl.u32 %v233, 7
    %v235 = vsub.s32 0, %v234
    %v236 = vrot.slane %v231, %v235
    %v366 = vunpack.c.l.b16 %v103
    %v367 = vunpack.c.l.b16 %v104
    %v368 = vunpack.c.l.b16 %v105
    %v369 = vunpack.c.l.b16 %v106
    %v370 = vunpack.c.l.b16 %v107
    %v371 = vunpack.c.l.b16 %v108
    %v372 = vunpack.c.l.b16 %v109
    %v373 = vunpack.c.l.b16 %v110
    %v374 = vunpack.c.l.b16 %v111
    %v375 = vunpack.c.l.b16 %v112
    %v376 = vunpack.c.l.b16 %v113
    %v377 = vunpack.c.l.b16 %v114
    %v378 = vunpack.c.l.b16 %v115
    %v379 = vunpack.c.l.b16 %v116
    %v380 = vunpack.c.l.b16 %v117
    %v381 = vunpack.c.l.b16 %v118
    %v382 = vunpack.c.l.b16 %v119
    %v383 = vunpack.c.l.b16 %v120
    %v384 = vunpack.c.l.b16 %v121
    %v385 = vunpack.c.l.b16 %v122
    %v386 = vunpack.c.l.b16 %v123
    %v387 = vunpack.c.l.b16 %v124
    %v388 = vunpack.c.l.b16 %v125
    %v389 = vunpack.c.l.b16 %v126
    %v390 = vunpack.c.l.b16 %v127
    %v391 = vunpack.c.l.b16 %v128
    %v392 = vunpack.c.l.b16 %v129
    %v393 = vunpack.c.l.b16 %v130
    %v394 = vunpack.c.l.b16 %v131
    %v395 = vunpack.c.l.b16 %v132
    %v396 = vunpack.c.l.b16 %v133
    %v397 = vunpack.c.l.b16 %v134
    %v398 = vunpack.c.l.b16 %v135
    %v399 = vunpack.c.l.b16 %v136
    %v400 = vunpack.c.l.b16 %v137
    %v401 = vunpack.c.l.b16 %v138
    %v402 = vunpack.c.l.b16 %v139
    %v403 = vunpack.c.l.b16 %v140
    %v404 = vunpack.c.l.b16 %v141
    %v405 = vunpack.c.l.b16 %v142
    %v406 = vunpack.c.l.b16 %v143
    %v407 = vunpack.c.l.b16 %v144
    %v408 = vunpack.c.l.b16 %v145
    %v409 = vunpack.c.l.b16 %v146
    %v410 = vunpack.c.l.b16 %v147
    %v411 = vunpack.c.l.b16 %v148
    %v412 = vunpack.c.l.b16 %v149
    %v413 = vunpack.c.l.b16 %v150
    %v414 = vunpack.c.l.b16 %v151
    %v415 = vunpack.c.l.b16 %v152
    %v416 = vunpack.c.l.b16 %v153
    %v417 = vunpack.c.l.b16 %v154
    %v418 = vunpack.c.l.b16 %v155
    %v419 = vunpack.c.l.b16 %v156
    %v420 = vunpack.c.l.b16 %v157
    %v421 = vunpack.c.l.b16 %v158
    %v422 = vunpack.c.l.b16 %v159
    %v423 = vunpack.c.l.b16 %v160
    %v424 = vunpack.c.l.b16 %v161
    %v425 = vunpack.c.l.b16 %v162
    %v426 = vunpack.c.l.b16 %v163
    %v427 = vunpack.c.l.b16 %v164
    %v428 = vunpack.c.l.b16 %v165
    %v429 = vunpack.c.l.b16 %v166
    %v430 = vunpack.c.l.b16 %v167
    %v431 = vunpack.c.l.b16 %v168
    %v432 = vunpack.c.l.b16 %v169
    %v433 = vunpack.c.l.b16 %v170
    %v434 = vunpack.c.l.b16 %v171
    %v435 = vunpack.c.l.b16 %v172
    %v436 = vunpack.c.l.b16 %v173
    %v437 = vunpack.c.l.b16 %v174
    %v438 = vunpack.c.l.b16 %v175
    %v439 = vunpack.c.l.b16 %v176
    %v440 = vunpack.c.l.b16 %v177
    %v441 = vunpack.c.l.b16 %v178
    %v442 = vunpack.c.l.b16 %v179
    %v443 = vunpack.c.l.b16 %v180
    %v444 = vunpack.c.l.b16 %v181
    %v445 = vunpack.c.l.b16 %v182
    %v446 = vunpack.c.l.b16 %v183
    %v447 = vunpack.c.l.b16 %v184
    %v448 = vunpack.c.l.b16 %v185
    %v449 = vunpack.c.l.b16 %v186
    %v450 = vunpack.c.l.b16 %v187
    %v451 = vunpack.c.l.b16 %v188
    %v452 = vunpack.c.l.b16 %v189
    %v453 = vunpack.c.l.b16 %v190
    %v454 = vunpack.c.l.b16 %v191
    %v455 = vunpack.c.l.b16 %v192
    %v456 = vunpack.c.l.b16 %v193
    %v457 = vunpack.c.l.b16 %v194
    %v458 = vunpack.c.l.b16 %v195
    %v459 = vunpack.c.l.b16 %v196
    %v460 = vunpack.c.l.b16 %v197
    %v461 = vunpack.c.l.b16 %v198
    %v462 = vunpack.c.l.b16 %v199
    %v463 = vunpack.c.l.b16 %v200
    %v464 = vunpack.c.l.b16 %v201
    %v465 = vunpack.c.l.b16 %v202
    %v466 = vunpack.c.l.b16 %v203
    %v467 = vunpack.c.l.b16 %v204
    %v468 = vunpack.c.l.b16 %v205
    %v469 = vunpack.c.l.b16 %v206
    %v470 = vunpack.c.l.b16 %v207
    %v471 = vunpack.c.l.b16 %v208
    %v472 = vunpack.c.l.b16 %v209
    %v473 = vunpack.c.l.b16 %v210
    %v474 = vunpack.c.l.b16 %v211
    %v475 = vunpack.c.l.b16 %v212
    %v476 = vunpack.c.l.b16 %v213
    %v477 = vunpack.c.l.b16 %v214
    %v478 = vunpack.c.l.b16 %v215
    %v479 = vunpack.c.l.b16 %v216
    %v480 = vunpack.c.l.b16 %v217
    %v481 = vunpack.c.l.b16 %v218
    %v482 = vunpack.c.l.b16 %v219
    %v483 = vunpack.c.l.b16 %v220
    %v484 = vunpack.c.l.b16 %v221
    %v485 = vunpack.c.l.b16 %v222
    %v486 = vunpack.c.l.b16 %v223
    %v487 = vunpack.c.l.b16 %v224
    %v488 = vunpack.c.l.b16 %v225
    %v489 = vunpack.c.l.b16 %v226
    %v490 = vunpack.c.l.b16 %v227
    %v491 = vunpack.c.l.b16 %v228
    %v492 = vunpack.c.l.b16 %v229
    %v493 = vunpack.c.l.b16 %v230
    %v494 = vpack.c.b16 %v367, %v366
    %v495 = vpack.c.b16 %v369, %v368
    %v496 = vpack.c.b16 %v371, %v370
    %v497 = vpack.c.b16 %v373, %v372
    %v498 = vpack.c.b16 %v375, %v374
    %v499 = vpack.c.b16 %v377, %v376
    %v500 = vpack.c.b16 %v379, %v378
    %v501 = vpack.c.b16 %v381, %v380
    %v502 = vpack.c.b16 %v383, %v382
    %v503 = vpack.c.b16 %v385, %v384
    %v504 = vpack.c.b16 %v387, %v386
    %v505 = vpack.c.b16 %v389, %v388
    %v506 = vpack.c.b16 %v391, %v390
    %v507 = vpack.c.b16 %v393, %v392
    %v508 = vpack.c.b16 %v395, %v394
    %v509 = vpack.c.b16 %v397, %v396
    %v510 = vpack.c.b16 %v399, %v398
    %v511 = vpack.c.b16 %v401, %v400
    %v512 = vpack.c.b16 %v403, %v402
    %v513 = vpack.c.b16 %v405, %v404
    %v514 = vpack.c.b16 %v407, %v406
    %v515 = vpack.c.b16 %v409, %v408
    %v516 = vpack.c.b16 %v411, %v410
    %v517 = vpack.c.b16 %v413, %v412
    %v518 = vpack.c.b16 %v415, %v414
    %v519 = vpack.c.b16 %v417, %v416
    %v520 = vpack.c.b16 %v419, %v418
    %v521 = vpack.c.b16 %v421, %v420
    %v522 = vpack.c.b16 %v423, %v422
    %v523 = vpack.c.b16 %v425, %v424
    %v524 = vpack.c.b16 %v427, %v426
    %v525 = vpack.c.b16 %v429, %v428
    %v526 = vpack.c.b16 %v431, %v430
    %v527 = vpack.c.b16 %v433, %v432
    %v528 = vpack.c.b16 %v435, %v434
    %v529 = vpack.c.b16 %v437, %v436
    %v530 = vpack.c.b16 %v439, %v438
    %v531 = vpack.c.b16 %v441, %v440
    %v532 = vpack.c.b16 %v443, %v442
    %v533 = vpack.c.b16 %v445, %v444
    %v534 = vpack.c.b16 %v447, %v446
    %v535 = vpack.c.b16 %v449, %v448
    %v536 = vpack.c.b16 %v451, %v450
    %v537 = vpack.c.b16 %v453, %v452
    %v538 = vpack.c.b16 %v455, %v454
    %v539 = vpack.c.b16 %v457, %v456
    %v540 = vpack.c.b16 %v459, %v458
    %v541 = vpack.c.b16 %v461, %v460
    %v542 = vpack.c.b16 %v463, %v462
    %v543 = vpack.c.b16 %v465, %v464
    %v544 = vpack.c.b16 %v467, %v466
    %v545 = vpack.c.b16 %v469, %v468
    %v546 = vpack.c.b16 %v471, %v470
    %v547 = vpack.c.b16 %v473, %v472
    %v548 = vpack.c.b16 %v475, %v474
    %v549 = vpack.c.b16 %v477, %v476
    %v550 = vpack.c.b16 %v479, %v478
    %v551 = vpack.c.b16 %v481, %v480
    %v552 = vpack.c.b16 %v483, %v482
    %v553 = vpack.c.b16 %v485, %v484
    %v554 = vpack.c.b16 %v487, %v486
    %v555 = vpack.c.b16 %v489, %v488
    %v556 = vpack.c.b16 %v491, %v490
    %v557 = vpack.c.b16 %v493, %v492
    %622 = vmatprep.subr.bf16.mxu0 0
    %623 = vmatpush1.bf16.msra.mxu0 %v501
    %624 = vmatprep.subr.bf16.mxu0 0
    %625 = vmatpush1.bf16.msra.mxu0 %v500
    %626 = vmatprep.subr.bf16.mxu0 0
    %627 = vmatpush1.bf16.msra.mxu0 %v499
    %628 = vmatprep.subr.bf16.mxu0 0
    %629 = vmatpush1.bf16.msra.mxu0 %v498
    %630 = vmatprep.subr.bf16.mxu0 0
    %631 = vmatpush1.bf16.msra.mxu0 %v497
    %632 = vmatprep.subr.bf16.mxu0 0
    %633 = vmatpush1.bf16.msra.mxu0 %v496
    %634 = vmatprep.subr.bf16.mxu0 0
    %635 = vmatpush1.bf16.msra.mxu0 %v495
    %636 = vmatprep.subr.bf16.mxu0 0
    %637 = vmatpush1.bf16.msra.mxu0 %v494
    %638 = vmatprep.subr.bf16.mxu0 0
    %639 = vmatpush2.bf16.msra.mxu0 %v509
    %640 = vmatprep.subr.bf16.mxu0 0
    %641 = vmatpush2.bf16.msra.mxu0 %v508
    %642 = vmatprep.subr.bf16.mxu0 0
    %643 = vmatpush2.bf16.msra.mxu0 %v507
    %644 = vmatprep.subr.bf16.mxu0 0
    %645 = vmatpush2.bf16.msra.mxu0 %v506
    %646 = vmatprep.subr.bf16.mxu0 0
    %647 = vmatpush2.bf16.msra.mxu0 %v505
    %648 = vmatprep.subr.bf16.mxu0 0
    %649 = vmatpush2.bf16.msra.mxu0 %v504
    %650 = vmatprep.subr.bf16.mxu0 0
    %651 = vmatpush2.bf16.msra.mxu0 %v503
    %652 = vmatprep.subr.bf16.mxu0 0
    %653 = vmatpush2.bf16.msra.mxu0 %v502
    %654 = vmatprep.mubr.bf16.mxu0 %v96
    %655 = vmatmul.mubr.bf16.gmra.mxu0 %v95
    %v656 = vpop.f32.mrf.mxu0
    %v657 = vadd.f32 %v236, %v656
    %v658 = vpop.f32.mrf.mxu0
    %v659 = vpop.f32.mrf.mxu0
    %v660 = vpop.f32.mrf.mxu0
    %661 = vdwg.mxu0
    %662 = vmatprep.subr.bf16.mxu0 0
    %663 = vmatpush1.bf16.msra.mxu0 %v517
    %664 = vmatprep.subr.bf16.mxu0 0
    %665 = vmatpush1.bf16.msra.mxu0 %v516
    %666 = vmatprep.subr.bf16.mxu0 0
    %667 = vmatpush1.bf16.msra.mxu0 %v515
    %668 = vmatprep.subr.bf16.mxu0 0
    %669 = vmatpush1.bf16.msra.mxu0 %v514
    %670 = vmatprep.subr.bf16.mxu0 0
    %671 = vmatpush1.bf16.msra.mxu0 %v513
    %672 = vmatprep.subr.bf16.mxu0 0
    %673 = vmatpush1.bf16.msra.mxu0 %v512
    %674 = vmatprep.subr.bf16.mxu0 0
    %675 = vmatpush1.bf16.msra.mxu0 %v511
    %676 = vmatprep.subr.bf16.mxu0 0
    %677 = vmatpush1.bf16.msra.mxu0 %v510
    %678 = vmatprep.subr.bf16.mxu0 0
    %679 = vmatpush2.bf16.msra.mxu0 %v525
    %680 = vmatprep.subr.bf16.mxu0 0
    %681 = vmatpush2.bf16.msra.mxu0 %v524
    %682 = vmatprep.subr.bf16.mxu0 0
    %683 = vmatpush2.bf16.msra.mxu0 %v523
    %684 = vmatprep.subr.bf16.mxu0 0
    %685 = vmatpush2.bf16.msra.mxu0 %v522
    %686 = vmatprep.subr.bf16.mxu0 0
    %687 = vmatpush2.bf16.msra.mxu0 %v521
    %688 = vmatprep.subr.bf16.mxu0 0
    %689 = vmatpush2.bf16.msra.mxu0 %v520
    %690 = vmatprep.subr.bf16.mxu0 0
    %691 = vmatpush2.bf16.msra.mxu0 %v519
    %692 = vmatprep.subr.bf16.mxu0 0
    %693 = vmatpush2.bf16.msra.mxu0 %v518
    %694 = vmatprep.mubr.bf16.mxu0 %v98
    %695 = vmatmul.mubr.bf16.gmra.mxu0 %v97
    %v696 = vpop.f32.mrf.mxu0
    %v697 = vadd.f32 %v657, %v696
    %v698 = vpop.f32.mrf.mxu0
    %v699 = vpop.f32.mrf.mxu0
    %v700 = vpop.f32.mrf.mxu0
    %701 = vdwg.mxu0
    %702 = vmatprep.subr.bf16.mxu0 0
    %703 = vmatpush1.bf16.msra.mxu0 %v533
    %704 = vmatprep.subr.bf16.mxu0 0
    %705 = vmatpush1.bf16.msra.mxu0 %v532
    %706 = vmatprep.subr.bf16.mxu0 0
    %707 = vmatpush1.bf16.msra.mxu0 %v531
    %708 = vmatprep.subr.bf16.mxu0 0
    %709 = vmatpush1.bf16.msra.mxu0 %v530
    %710 = vmatprep.subr.bf16.mxu0 0
    %711 = vmatpush1.bf16.msra.mxu0 %v529
    %712 = vmatprep.subr.bf16.mxu0 0
    %713 = vmatpush1.bf16.msra.mxu0 %v528
    %714 = vmatprep.subr.bf16.mxu0 0
    %715 = vmatpush1.bf16.msra.mxu0 %v527
    %716 = vmatprep.subr.bf16.mxu0 0
    %717 = vmatpush1.bf16.msra.mxu0 %v526
    %718 = vmatprep.subr.bf16.mxu0 0
    %719 = vmatpush2.bf16.msra.mxu0 %v541
    %720 = vmatprep.subr.bf16.mxu0 0
    %721 = vmatpush2.bf16.msra.mxu0 %v540
    %722 = vmatprep.subr.bf16.mxu0 0
    %723 = vmatpush2.bf16.msra.mxu0 %v539
    %724 = vmatprep.subr.bf16.mxu0 0
    %725 = vmatpush2.bf16.msra.mxu0 %v538
    %726 = vmatprep.subr.bf16.mxu0 0
    %727 = vmatpush2.bf16.msra.mxu0 %v537
    %728 = vmatprep.subr.bf16.mxu0 0
    %729 = vmatpush2.bf16.msra.mxu0 %v536
    %730 = vmatprep.subr.bf16.mxu0 0
    %731 = vmatpush2.bf16.msra.mxu0 %v535
    %732 = vmatprep.subr.bf16.mxu0 0
    %733 = vmatpush2.bf16.msra.mxu0 %v534
    %734 = vmatprep.mubr.bf16.mxu0 %v100
    %735 = vmatmul.mubr.bf16.gmra.mxu0 %v99
    %v736 = vpop.f32.mrf.mxu0
    %v737 = vadd.f32 %v697, %v736
    %v738 = vpop.f32.mrf.mxu0
    %v739 = vpop.f32.mrf.mxu0
    %v740 = vpop.f32.mrf.mxu0
    %741 = vdwg.mxu0
    %742 = vmatprep.subr.bf16.mxu0 0
    %743 = vmatpush1.bf16.msra.mxu0 %v549
    %744 = vmatprep.subr.bf16.mxu0 0
    %745 = vmatpush1.bf16.msra.mxu0 %v548
    %746 = vmatprep.subr.bf16.mxu0 0
    %747 = vmatpush1.bf16.msra.mxu0 %v547
    %748 = vmatprep.subr.bf16.mxu0 0
    %749 = vmatpush1.bf16.msra.mxu0 %v546
    %750 = vmatprep.subr.bf16.mxu0 0
    %751 = vmatpush1.bf16.msra.mxu0 %v545
    %752 = vmatprep.subr.bf16.mxu0 0
    %753 = vmatpush1.bf16.msra.mxu0 %v544
    %754 = vmatprep.subr.bf16.mxu0 0
    %755 = vmatpush1.bf16.msra.mxu0 %v543
    %756 = vmatprep.subr.bf16.mxu0 0
    %757 = vmatpush1.bf16.msra.mxu0 %v542
    %758 = vmatprep.subr.bf16.mxu0 0
    %759 = vmatpush2.bf16.msra.mxu0 %v557
    %760 = vmatprep.subr.bf16.mxu0 0
    %761 = vmatpush2.bf16.msra.mxu0 %v556
    %762 = vmatprep.subr.bf16.mxu0 0
    %763 = vmatpush2.bf16.msra.mxu0 %v555
    %764 = vmatprep.subr.bf16.mxu0 0
    %765 = vmatpush2.bf16.msra.mxu0 %v554
    %766 = vmatprep.subr.bf16.mxu0 0
    %767 = vmatpush2.bf16.msra.mxu0 %v553
    %768 = vmatprep.subr.bf16.mxu0 0
    %769 = vmatpush2.bf16.msra.mxu0 %v552
    %770 = vmatprep.subr.bf16.mxu0 0
    %771 = vmatpush2.bf16.msra.mxu0 %v551
    %772 = vmatprep.subr.bf16.mxu0 0
    %773 = vmatpush2.bf16.msra.mxu0 %v550
    %774 = vmatprep.mubr.bf16.mxu0 %v102
    %775 = vmatmul.mubr.bf16.gmra.mxu0 %v101
    %v776 = vpop.f32.mrf.mxu0
    %v777 = vadd.f32 %v737, %v776
    %v778 = vpop.f32.mrf.mxu0
    %v779 = vpop.f32.mrf.mxu0
    %v780 = vpop.f32.mrf.mxu0
    %781 = vdwg.mxu0
    %782 = vst [vmem:[#allocation7] sm:$0x3] %v777
    %v783 = vmul.f32 %v777, 0.5
    %v784 = vmul.f32 %v783, 1.442695
    %v785 = vpow.pop %v784
    %v786 = vld [vmem:[%s3] sm:$0x3]
    %788 = vrot.lane.b32.xlu0 %v777, 32
    %v789 = vpop.permute.xlu0 %788
    %791 = vrot.lane.b32.xlu0 %v777, 64
    %v792 = vpop.permute.xlu0 %791
    %794 = vrot.lane.b32.xlu0 %v777, 96
    %v795 = vpop.permute.xlu0 %794
    %vm797 = vcmask 261120
    %v798 = vsel %vm797, %v777, %v789
    %vm799 = vcmask 523264
    %v800 = vsel %vm799, %v798, %v792
    %vm801 = vcmask 785408
    %v802 = vsel %vm801, %v800, %v795
    %804 = vrot.lane.b32.xlu0 %v785, 96
    %v805 = vpop.permute.xlu0 %804
    %807 = vrot.lane.b32.xlu0 %v785, 32
    %v808 = vpop.permute.xlu0 %807
    %810 = vrot.lane.b32.xlu0 %v785, 64
    %v811 = vpop.permute.xlu0 %810
    %v813 = vsel %vm797, %v805, %v785
    %v814 = vsel %vm799, %v813, %v808
    %v815 = vsel %vm801, %v814, %v811
    %v816 = vmul.f32 %v786, %v815
    %v817 = vadd.f32 %v802, %v816
    %818 = vst [vmem:[#allocation8] sm:$0x3] %v817
    %v819 = vmul.f32 %v785, %v785
    %v820 = vmul.f32 %v777, %v777
    %822 = vrot.lane.b32.xlu0 %v819, 96
    %v823 = vpop.permute.xlu0 %822
    %v825 = vadd.f32 %v820, %v823
    %v826 = vsub.f32 %v825, %v795
    %v827 = vsub.f32 %v826, 1.0
    %vm828 = vcmask 254976
    %v829 = vsel %vm828, %v827, 0.0
    %830 = vadd.xlane.f32.xlu0 %v829
    %v831 = vpop.xlane.xlu0 %830
    %v832 = vmul.f32 %v831, 0.5
    %vm833 = vcmask 1024
    %834 = vst.msk [vmem:[%s6] sm:$0x3] %vm833, %v832
    // Predicated region
    $region26: #{tpu_custom_call.1} parent=1 // pred_check
      _
    $region27: #{tpu_custom_call.1} parent=1 // pred_check_branch
      %836 = sbr.rel (0) target = $region29
    $region28: #{tpu_custom_call.1} parent=1 // pred_region
      %s838 = ssub.s32 32, 32
      %839 = vsyncadd [#allocation4], %s838
      %s841 = sshll.u32 [#allocation7], 4
      %s842 = int_to_ptr.vmem [resolvable:$true] %s841
      %844 = dma.vmem_to_hbm [thread:$0]  %s842, 32, %s4, [#allocation4]
    $region29: #{tpu_custom_call.1} parent=1 // pred_fallthru
      _
    // Predicated region
    $region30: #{tpu_custom_call.1} parent=1 // pred_check
      _
    $region31: #{tpu_custom_call.1} parent=1 // pred_check_branch
      %846 = sbr.rel (0) target = $region33
    $region32: #{tpu_custom_call.1} parent=1 // pred_region
      %s848 = ssub.s32 32, 32
      %849 = vsyncadd [#allocation9], %s848
      %s851 = sshll.u32 [#allocation8], 4
      %s852 = int_to_ptr.vmem [resolvable:$true] %s851
      %854 = dma.vmem_to_hbm [thread:$0]  %s852, 32, %s5, [#allocation9]
    $region33: #{tpu_custom_call.1} parent=1 // pred_fallthru
      _
    // Predicated region
    $region34: #{tpu_custom_call.1} parent=1 // pred_check
      _
    $region35: #{tpu_custom_call.1} parent=1 // pred_check_branch
      %856 = sbr.rel (0) target = $region37
    $region36: #{tpu_custom_call.1} parent=1 // pred_region
      _
    $region37: #{tpu_custom_call.1} parent=1 // pred_fallthru
      _
    // Predicated region
    $region38: #{tpu_custom_call.1} parent=1 // pred_check
      _
    $region39: #{tpu_custom_call.1} parent=1 // pred_check_branch
      %858 = sbr.rel (0) target = $region41
    $region40: #{tpu_custom_call.1} parent=1 // pred_region
      %859 = dma.done [#allocation4], 32
    $region41: #{tpu_custom_call.1} parent=1 // pred_fallthru
      _
    // Predicated region
    $region42: #{tpu_custom_call.1} parent=1 // pred_check
      _
    $region43: #{tpu_custom_call.1} parent=1 // pred_check_branch
      %861 = sbr.rel (0) target = $region45
    $region44: #{tpu_custom_call.1} parent=1 // pred_region
      %862 = dma.done [#allocation9], 32
    $region45: #{tpu_custom_call.1} parent=1 // pred_fallthru
      _
    // Predicated region
    $region46: #{tpu_custom_call.1} parent=1 // pred_check
      _
    $region47: #{tpu_custom_call.1} parent=1 // pred_check_branch
      %864 = sbr.rel (0) target = $region49
    $region48: #{tpu_custom_call.1} parent=1 // pred_region
      _
    $region49: #{tpu_custom_call.1} parent=1 // pred_fallthru
      _
    %865 = vsyncpa [#allocation3], 1
    %866 = vsyncpa [#allocation6], 1
    %867 = vsyncpa [#allocation4], 1
    %868 = vsyncpa [#allocation9], 1

</llo_original>
